<compile_context>
chip_gen: v6e
topology: v6e:2x2x1
jax: 0.10.0
libtpu: 0.0.40
codegen_flags: <defaults>
</compile_context>

<pallas_src>
import numpy as np
import jax
import jax.numpy as jnp
from jax.experimental import pallas as pl
from jax.experimental.pallas import tpu as pltpu

EPS = 1e-5      # nn.BatchNorm2d default eps
SLOPE = 0.02    # nn.LeakyReLU(0.02)

_TAP_BLOCK = 32                       # lane block per conv2 tap (32-aligned)
_N_TAPS = 9
_GCAT_COLS = _N_TAPS * _TAP_BLOCK     # 288


# ------------------------------ in-kernel helpers --------------------------- #

def _leaky(v):
    return jnp.where(v >= 0.0, v, SLOPE * v)


def _bn_train(y, gamma, beta, inv_n):
    """Two-pass batch-norm (training-mode batch stats, biased variance)."""
    mean = jnp.sum(y, axis=1, keepdims=True) * inv_n
    d = y - mean
    var = jnp.sum(d * d, axis=1, keepdims=True) * inv_n
    return d * (gamma * jax.lax.rsqrt(var + EPS)) + beta


def _floordiv_small(x, d, max_q):
    """x // d for small non-negative x using only compare+add (no int div)."""
    acc = jnp.where(x >= d, 1, 0)
    for j in range(2, max_q + 1):
        acc = acc + jnp.where(x >= d * j, 1, 0)
    return acc


def _conv2_selection_matrix():
    """(144, 288) f32 one-hot selection matrix, built in-kernel from iota.

    Column kk*32 + q (q < 25 valid; kk = 3*ki + kj; q = 5*oh + ow) selects
    source lane (2*oh + ki)*12 + 2*ow + kj of the (10, 144) conv1 activation.
    Only VPU compare/select ops -> no HBM DMA for the ~160 KB matrix.
    """
    col = jax.lax.broadcasted_iota(jnp.int32, (1, _GCAT_COLS), 1)
    kk = _floordiv_small(col, _TAP_BLOCK, _N_TAPS - 1)
    q = col - _TAP_BLOCK * kk
    ki = _floordiv_small(kk, 3, 2)
    kj = kk - 3 * ki
    oh = _floordiv_small(q, 5, 6)
    ow = q - 5 * oh
    target = 24 * oh + 2 * ow + 12 * ki + kj          # (1, 288) source lane
    valid = q < 25
    lane = jax.lax.broadcasted_iota(jnp.int32, (144, _GCAT_COLS), 0)
    hit = jnp.logical_and(lane == target, valid)
    return jnp.where(hit, 1.0, 0.0).astype(jnp.float32)


# ------------------------------ fused Pallas kernel ------------------------- #

def classifier_kernel(p1_ref, slab_ref, w3p_ref, o_ref):
    """Whole forward in one kernel.  Layout: rows = channels, lanes = positions.

      p1_ref   (25, 144)     im2col patches of the 28x28 input (K1=25, P1=144)
      slab_ref (32, 128)     packed small parameters (see pack_params)
      w3p_ref  (10, 25, 10)  Linear(250,10) weight arranged (c_in, pos, c_out)
      o_ref    (1, 10)       sigmoid outputs
    """
    f32 = jnp.float32

    # ---- carve the packed parameter slab (static views, zero-cost-ish) ----
    P = slab_ref[...]                                   # (32, 128), one load
    chan = P[0:10, :]
    w1f = chan[:, 0:25]                                 # conv1 weight (co, k)
    b1, g1, be1 = chan[:, 32:33], chan[:, 33:34], chan[:, 34:35]
    b2, g2, be2 = chan[:, 35:36], chan[:, 36:37], chan[:, 37:38]
    b3 = P[10:11, 0:10]                                 # (1, 10)
    w2blk = P[16:26, :]                                 # tap kk at cols [12kk, 12kk+10)

    # ---- Conv2d(1,10,5,s=2) + LeakyReLU(0.02) + BatchNorm2d(10) ----
    y1 = jnp.dot(w1f, p1_ref[...], preferred_element_type=f32) + b1      # (10,144)
    y1 = _bn_train(_leaky(y1), g1, be1, 1.0 / 144.0)

    # ---- Conv2d(10,10,3,s=2): one selection matmul + 9 independent taps ----
    gcat = _conv2_selection_matrix()                                     # (144,288)
    s_all = jnp.dot(y1, gcat, preferred_element_type=f32)                # (10, 288)
    parts = [None, None, None]   # 3 independent partials -> no serial MRF chain
    for kk in range(_N_TAPS):
        win = s_all[:, kk * _TAP_BLOCK:(kk + 1) * _TAP_BLOCK]            # (10, 32)
        w2_kk = w2blk[:, kk * 12:kk * 12 + 10]                           # (10, 10)
        t = jnp.dot(w2_kk, win, preferred_element_type=f32)
        parts[kk % 3] = t if parts[kk % 3] is None else parts[kk % 3] + t
    y2 = (parts[0] + parts[1] + parts[2])[:, 0:25] + b2                  # (10, 25)
    y2 = _bn_train(_leaky(y2), g2, be2, 1.0 / 25.0)

    # ---- Flatten(0,-1) + Linear(250,10): 10 independent dots + tree-sum ----
    # Row-major (channel, pos) order of y2 == PyTorch flatten order (c, h, w).
    ts = [jnp.dot(y2[c:c + 1, :], w3p_ref[c], preferred_element_type=f32)
          for c in range(10)]                                            # each (1,10)
    while len(ts) > 1:
        nxt = [ts[i] + ts[i + 1] for i in range(0, len(ts) - 1, 2)]
        if len(ts) % 2:
            nxt.append(ts[-1])
        ts = nxt
    out = ts[0] + b3                                                     # (1, 10)

    # ---- Sigmoid (stable): sig(x) = r if x>=0 else z*r, z=exp(-|x|), r=1/(1+z)
    z = jnp.exp(-jnp.abs(out))
    r = pl.reciprocal(1.0 + z, approx=True)   # EUP slot, effectively free
    o_ref[...] = jnp.where(out >= 0.0, r, z * r)
    # NOTE: the (1,10) store is a masked partial store; padding it to (1,128)
    # would require padding the Linear weight's output dim (bigger DMA) — at
    # this size the masked store is negligible, so we keep the compact weight.


# ------------------------------ pallas_call wrapper -------------------------- #

def classifier_pallas(p1, slab, w3p):
    vmem = lambda: pl.BlockSpec(memory_space=pltpu.MemorySpace.VMEM)
    return pl.pallas_call(
        classifier_kernel,
        out_shape=jax.ShapeDtypeStruct((1, 10), jnp.float32),
        in_specs=[vmem(), vmem(), vmem()],
        out_specs=vmem(),
    )(p1, slab, w3p)


# ------------------------------ host-side glue ------------------------------- #

def _build_conv1_gather_indices():
    """(25, 144) flat-source indices so p1 = x.reshape(-1)[idx] is ONE gather."""
    idx = np.zeros((25, 144), np.int32)
    for ki in range(5):
        for kj in range(5):
            k = ki * 5 + kj
            for oh in range(12):
                for ow in range(12):
                    idx[k, oh * 12 + ow] = (2 * oh + ki) * 28 + (2 * ow + kj)
    return idx


_CONV1_IDX = _build_conv1_gather_indices()
# TODO(synk): the conv1 im2col stays as a single host-side XLA gather; folding
# it into the kernel would require an in-kernel sublane->lane flatten (relayout)
# with uncertain Mosaic support at these odd shapes.


def init_params(key):
    """Deterministic synthetic parameters with the shapes implied by the module."""
    ks = jax.random.split(key, 6)
    return dict(
        w1=jax.random.normal(ks[0], (10, 1, 5, 5), jnp.float32) * 0.1,   # Conv2d(1,10,5,s=2)
        b1=jax.random.normal(ks[1], (10,), jnp.float32) * 0.1,
        g1=jnp.ones((10,), jnp.float32),                                  # BatchNorm2d(10) weight
        be1=jnp.zeros((10,), jnp.float32),                                # BatchNorm2d(10) bias
        w2=jax.random.normal(ks[2], (10, 10, 3, 3), jnp.float32) * 0.1,   # Conv2d(10,10,3,s=2)
        b2=jax.random.normal(ks[3], (10,), jnp.float32) * 0.1,
        g2=jnp.ones((10,), jnp.float32),
        be2=jnp.zeros((10,), jnp.float32),
        w3=jax.random.normal(ks[4], (10, 250), jnp.float32) * 0.05,       # Linear(250, 10)
        b3=jax.random.normal(ks[5], (10,), jnp.float32) * 0.05,
    )


def pack_params(params):
    """One-time re-layout:
       * single (32, 128) f32 slab (one DMA for all 10 tiny tensors)
         rows 0..9 : w1 flat (cols 0..24); b1,g1,be1,b2,g2,be2 at cols 32..37
         row  10   : b3 (cols 0..9)
         rows 16..25: conv2 weight, tap kk = 3*ki+kj at cols [12kk, 12kk+10) as (co, ci)
       * Linear weight as (c_in, pos, c_out)."""
    slab = np.zeros((32, 128), np.float32)
    slab[0:10, 0:25] = np.asarray(params["w1"]).reshape(10, 25)
    slab[0:10, 32] = np.asarray(params["b1"])
    slab[0:10, 33] = np.asarray(params["g1"])
    slab[0:10, 34] = np.asarray(params["be1"])
    slab[0:10, 35] = np.asarray(params["b2"])
    slab[0:10, 36] = np.asarray(params["g2"])
    slab[0:10, 37] = np.asarray(params["be2"])
    slab[10, 0:10] = np.asarray(params["b3"])
    w2 = np.asarray(params["w2"])                                         # (co, ci, 3, 3)
    for ki in range(3):
        for kj in range(3):
            kk = ki * 3 + kj
            slab[16:26, kk * 12:kk * 12 + 10] = w2[:, :, ki, kj]
    w3p = jnp.transpose(jnp.reshape(params["w3"], (10, 10, 25)), (1, 2, 0))  # (c,q,o)
    return jnp.asarray(slab), w3p


@jax.jit
def classifier_forward(x, slab, w3p):
    """x: (1, 1, 28, 28) NCHW  ->  (10,) sigmoid probabilities."""
    p1 = x.reshape(-1)[_CONV1_IDX]               # single fused gather -> (25, 144)
    return classifier_pallas(p1, slab, w3p).reshape(10)


# ------------------------------ pure-JAX reference --------------------------- #

def reference_forward(x, params):
    hi = jax.lax.Precision.HIGHEST
    dn = ("NCHW", "OIHW", "NCHW")

    def block(y, w, b, g, be):
        y = jax.lax.conv_general_dilated(y, w, (2, 2), "VALID",
                                         dimension_numbers=dn, precision=hi)
        y = y + b[None, :, None, None]
        y = jnp.where(y >= 0.0, y, SLOPE * y)
        mean = jnp.mean(y, axis=(0, 2, 3), keepdims=True)
        var = jnp.mean((y - mean) ** 2, axis=(0, 2, 3), keepdims=True)
        return ((y - mean) / jnp.sqrt(var + EPS) * g[None, :, None, None]
                + be[None, :, None, None])

    y = block(x, params["w1"], params["b1"], params["g1"], params["be1"])
    y = block(y, params["w2"], params["b2"], params["g2"], params["be2"])
    flat = y.reshape(-1)                                                   # (250,)
    out = jnp.dot(params["w3"], flat, precision=hi) + params["b3"]
    return jax.nn.sigmoid(out)

# TODO(synk): BCELoss / Adam training step (train(), plot_progress()) are host-side
# training utilities, not part of the forward pass, and are not implemented as kernels.
# TODO(synk): for multi-image throughput add a leading batch grid dimension
# (dimension_semantics=("parallel",)); the module itself is batch-1 due to Flatten(0,-1).


if __name__ == "__main__":
    key = jax.random.PRNGKey(0)
    x_key, p_key = jax.random.split(key)
    x = jax.random.normal(x_key, (1, 1, 28, 28), jnp.float32)
    params = init_params(p_key)
    slab, w3p = pack_params(params)

    out = classifier_forward(x, slab, w3p)
    out = jax.block_until_ready(out)
    ref = jax.block_until_ready(reference_forward(x, params))

    assert out.shape == (10,)
    assert bool(jnp.all(jnp.isfinite(out)))
    assert bool(jnp.all((out >= 0.0) & (out <= 1.0)))
    assert bool(jnp.allclose(out, ref, atol=1e-3, rtol=1e-3))
    print("KERNEL_OK")
</pallas_src>

<mosaic_0001>
module attributes {stable_mosaic.version = 11 : i64} {
  func.func @classifier_kernel(%arg0: memref<25x144xf32, #tpu.memory_space<vmem>>, %arg1: memref<32x128xf32, #tpu.memory_space<vmem>>, %arg2: memref<10x25x10xf32, #tpu.memory_space<vmem>>, %arg3: memref<1x10xf32, #tpu.memory_space<vmem>>) attributes {dimension_semantics = [], scalar_prefetch = 0 : i64, scratch_operands = 0 : i64, tpu.core_type = #tpu.core_type<tc>} {
    %c0 = arith.constant 0 : index
    %c0_0 = arith.constant 0 : index
    %0 = vector.load %arg1[%c0, %c0_0] : memref<32x128xf32, #tpu.memory_space<vmem>>, vector<32x128xf32>
    %1 = vector.extract_strided_slice %0 {offsets = [0, 0], sizes = [10, 128], strides = [1, 1]} : vector<32x128xf32> to vector<10x128xf32>
    %2 = vector.extract_strided_slice %1 {offsets = [0, 0], sizes = [10, 25], strides = [1, 1]} : vector<10x128xf32> to vector<10x25xf32>
    %3 = vector.extract_strided_slice %1 {offsets = [0, 32], sizes = [10, 1], strides = [1, 1]} : vector<10x128xf32> to vector<10x1xf32>
    %4 = vector.extract_strided_slice %1 {offsets = [0, 33], sizes = [10, 1], strides = [1, 1]} : vector<10x128xf32> to vector<10x1xf32>
    %5 = vector.extract_strided_slice %1 {offsets = [0, 34], sizes = [10, 1], strides = [1, 1]} : vector<10x128xf32> to vector<10x1xf32>
    %6 = vector.extract_strided_slice %1 {offsets = [0, 35], sizes = [10, 1], strides = [1, 1]} : vector<10x128xf32> to vector<10x1xf32>
    %7 = vector.extract_strided_slice %1 {offsets = [0, 36], sizes = [10, 1], strides = [1, 1]} : vector<10x128xf32> to vector<10x1xf32>
    %8 = vector.extract_strided_slice %1 {offsets = [0, 37], sizes = [10, 1], strides = [1, 1]} : vector<10x128xf32> to vector<10x1xf32>
    %9 = vector.extract_strided_slice %0 {offsets = [10, 0], sizes = [1, 10], strides = [1, 1]} : vector<32x128xf32> to vector<1x10xf32>
    %10 = vector.extract_strided_slice %0 {offsets = [16, 0], sizes = [10, 128], strides = [1, 1]} : vector<32x128xf32> to vector<10x128xf32>
    %c0_1 = arith.constant 0 : index
    %c0_2 = arith.constant 0 : index
    %11 = vector.load %arg0[%c0_1, %c0_2] : memref<25x144xf32, #tpu.memory_space<vmem>>, vector<25x144xf32>
    %cst = arith.constant dense<0.000000e+00> : vector<10x144xf32>
    %12 = tpu.matmul %2, %11, %cst {dimension_numbers = #tpu.dot_dimension_numbers<[1], [0], [0], [1], [0, 0, 1, 1], [], []>} : vector<10x25xf32>, vector<25x144xf32>, vector<10x144xf32> -> vector<10x144xf32>
    %13 = vector.broadcast %3 : vector<10x1xf32> to vector<10x144xf32>
    %14 = arith.addf %12, %13 : vector<10x144xf32>
    %cst_3 = arith.constant 0.000000e+00 : f32
    %15 = vector.broadcast %cst_3 : f32 to vector<10x144xf32>
    %16 = arith.cmpf oge, %14, %15 : vector<10x144xf32>
    %cst_4 = arith.constant 2.000000e-02 : f32
    %17 = vector.broadcast %cst_4 : f32 to vector<10x144xf32>
    %18 = arith.mulf %17, %14 : vector<10x144xf32>
    %19 = arith.select %16, %14, %18 : vector<10x144xi1>, vector<10x144xf32>
    %cst_5 = arith.constant dense<0.000000e+00> : vector<10xf32>
    %20 = vector.multi_reduction <add>, %19, %cst_5 [1] : vector<10x144xf32> to vector<10xf32>
    %21 = vector.shape_cast %20 : vector<10xf32> to vector<10x1xf32>
    %cst_6 = arith.constant 0.0069444445 : f32
    %22 = vector.broadcast %cst_6 : f32 to vector<10x1xf32>
    %23 = arith.mulf %21, %22 : vector<10x1xf32>
    %24 = vector.broadcast %23 : vector<10x1xf32> to vector<10x144xf32>
    %25 = arith.subf %19, %24 : vector<10x144xf32>
    %26 = arith.mulf %25, %25 : vector<10x144xf32>
    %cst_7 = arith.constant dense<0.000000e+00> : vector<10xf32>
    %27 = vector.multi_reduction <add>, %26, %cst_7 [1] : vector<10x144xf32> to vector<10xf32>
    %28 = vector.shape_cast %27 : vector<10xf32> to vector<10x1xf32>
    %cst_8 = arith.constant 0.0069444445 : f32
    %29 = vector.broadcast %cst_8 : f32 to vector<10x1xf32>
    %30 = arith.mulf %28, %29 : vector<10x1xf32>
    %cst_9 = arith.constant 9.99999974E-6 : f32
    %31 = vector.broadcast %cst_9 : f32 to vector<10x1xf32>
    %32 = arith.addf %30, %31 : vector<10x1xf32>
    %33 = math.rsqrt %32 : vector<10x1xf32>
    %34 = arith.mulf %4, %33 : vector<10x1xf32>
    %35 = vector.broadcast %34 : vector<10x1xf32> to vector<10x144xf32>
    %36 = arith.mulf %25, %35 : vector<10x144xf32>
    %37 = vector.broadcast %5 : vector<10x1xf32> to vector<10x144xf32>
    %38 = arith.addf %36, %37 : vector<10x144xf32>
    %39 = tpu.iota {dimensions = array<i32: 1>} : vector<1x288xi32>
    %c32_i32 = arith.constant 32 : i32
    %40 = vector.broadcast %c32_i32 : i32 to vector<1x288xi32>
    %41 = arith.cmpi sge, %39, %40 : vector<1x288xi32>
    %c1_i32 = arith.constant 1 : i32
    %c0_i32 = arith.constant 0 : i32
    %42 = vector.broadcast %c1_i32 : i32 to vector<1x288xi32>
    %43 = vector.broadcast %c0_i32 : i32 to vector<1x288xi32>
    %44 = arith.select %41, %42, %43 : vector<1x288xi1>, vector<1x288xi32>
    %c64_i32 = arith.constant 64 : i32
    %45 = vector.broadcast %c64_i32 : i32 to vector<1x288xi32>
    %46 = arith.cmpi sge, %39, %45 : vector<1x288xi32>
    %c1_i32_10 = arith.constant 1 : i32
    %c0_i32_11 = arith.constant 0 : i32
    %47 = vector.broadcast %c1_i32_10 : i32 to vector<1x288xi32>
    %48 = vector.broadcast %c0_i32_11 : i32 to vector<1x288xi32>
    %49 = arith.select %46, %47, %48 : vector<1x288xi1>, vector<1x288xi32>
    %50 = arith.addi %44, %49 : vector<1x288xi32>
    %c96_i32 = arith.constant 96 : i32
    %51 = vector.broadcast %c96_i32 : i32 to vector<1x288xi32>
    %52 = arith.cmpi sge, %39, %51 : vector<1x288xi32>
    %c1_i32_12 = arith.constant 1 : i32
    %c0_i32_13 = arith.constant 0 : i32
    %53 = vector.broadcast %c1_i32_12 : i32 to vector<1x288xi32>
    %54 = vector.broadcast %c0_i32_13 : i32 to vector<1x288xi32>
    %55 = arith.select %52, %53, %54 : vector<1x288xi1>, vector<1x288xi32>
    %56 = arith.addi %50, %55 : vector<1x288xi32>
    %c128_i32 = arith.constant 128 : i32
    %57 = vector.broadcast %c128_i32 : i32 to vector<1x288xi32>
    %58 = arith.cmpi sge, %39, %57 : vector<1x288xi32>
    %c1_i32_14 = arith.constant 1 : i32
    %c0_i32_15 = arith.constant 0 : i32
    %59 = vector.broadcast %c1_i32_14 : i32 to vector<1x288xi32>
    %60 = vector.broadcast %c0_i32_15 : i32 to vector<1x288xi32>
    %61 = arith.select %58, %59, %60 : vector<1x288xi1>, vector<1x288xi32>
    %62 = arith.addi %56, %61 : vector<1x288xi32>
    %c160_i32 = arith.constant 160 : i32
    %63 = vector.broadcast %c160_i32 : i32 to vector<1x288xi32>
    %64 = arith.cmpi sge, %39, %63 : vector<1x288xi32>
    %c1_i32_16 = arith.constant 1 : i32
    %c0_i32_17 = arith.constant 0 : i32
    %65 = vector.broadcast %c1_i32_16 : i32 to vector<1x288xi32>
    %66 = vector.broadcast %c0_i32_17 : i32 to vector<1x288xi32>
    %67 = arith.select %64, %65, %66 : vector<1x288xi1>, vector<1x288xi32>
    %68 = arith.addi %62, %67 : vector<1x288xi32>
    %c192_i32 = arith.constant 192 : i32
    %69 = vector.broadcast %c192_i32 : i32 to vector<1x288xi32>
    %70 = arith.cmpi sge, %39, %69 : vector<1x288xi32>
    %c1_i32_18 = arith.constant 1 : i32
    %c0_i32_19 = arith.constant 0 : i32
    %71 = vector.broadcast %c1_i32_18 : i32 to vector<1x288xi32>
    %72 = vector.broadcast %c0_i32_19 : i32 to vector<1x288xi32>
    %73 = arith.select %70, %71, %72 : vector<1x288xi1>, vector<1x288xi32>
    %74 = arith.addi %68, %73 : vector<1x288xi32>
    %c224_i32 = arith.constant 224 : i32
    %75 = vector.broadcast %c224_i32 : i32 to vector<1x288xi32>
    %76 = arith.cmpi sge, %39, %75 : vector<1x288xi32>
    %c1_i32_20 = arith.constant 1 : i32
    %c0_i32_21 = arith.constant 0 : i32
    %77 = vector.broadcast %c1_i32_20 : i32 to vector<1x288xi32>
    %78 = vector.broadcast %c0_i32_21 : i32 to vector<1x288xi32>
    %79 = arith.select %76, %77, %78 : vector<1x288xi1>, vector<1x288xi32>
    %80 = arith.addi %74, %79 : vector<1x288xi32>
    %c256_i32 = arith.constant 256 : i32
    %81 = vector.broadcast %c256_i32 : i32 to vector<1x288xi32>
    %82 = arith.cmpi sge, %39, %81 : vector<1x288xi32>
    %c1_i32_22 = arith.constant 1 : i32
    %c0_i32_23 = arith.constant 0 : i32
    %83 = vector.broadcast %c1_i32_22 : i32 to vector<1x288xi32>
    %84 = vector.broadcast %c0_i32_23 : i32 to vector<1x288xi32>
    %85 = arith.select %82, %83, %84 : vector<1x288xi1>, vector<1x288xi32>
    %86 = arith.addi %80, %85 : vector<1x288xi32>
    %c32_i32_24 = arith.constant 32 : i32
    %87 = vector.broadcast %c32_i32_24 : i32 to vector<1x288xi32>
    %88 = arith.muli %87, %86 : vector<1x288xi32>
    %89 = arith.subi %39, %88 : vector<1x288xi32>
    %c3_i32 = arith.constant 3 : i32
    %90 = vector.broadcast %c3_i32 : i32 to vector<1x288xi32>
    %91 = arith.cmpi sge, %86, %90 : vector<1x288xi32>
    %c1_i32_25 = arith.constant 1 : i32
    %c0_i32_26 = arith.constant 0 : i32
    %92 = vector.broadcast %c1_i32_25 : i32 to vector<1x288xi32>
    %93 = vector.broadcast %c0_i32_26 : i32 to vector<1x288xi32>
    %94 = arith.select %91, %92, %93 : vector<1x288xi1>, vector<1x288xi32>
    %c6_i32 = arith.constant 6 : i32
    %95 = vector.broadcast %c6_i32 : i32 to vector<1x288xi32>
    %96 = arith.cmpi sge, %86, %95 : vector<1x288xi32>
    %c1_i32_27 = arith.constant 1 : i32
    %c0_i32_28 = arith.constant 0 : i32
    %97 = vector.broadcast %c1_i32_27 : i32 to vector<1x288xi32>
    %98 = vector.broadcast %c0_i32_28 : i32 to vector<1x288xi32>
    %99 = arith.select %96, %97, %98 : vector<1x288xi1>, vector<1x288xi32>
    %100 = arith.addi %94, %99 : vector<1x288xi32>
    %c3_i32_29 = arith.constant 3 : i32
    %101 = vector.broadcast %c3_i32_29 : i32 to vector<1x288xi32>
    %102 = arith.muli %101, %100 : vector<1x288xi32>
    %103 = arith.subi %86, %102 : vector<1x288xi32>
    %c5_i32 = arith.constant 5 : i32
    %104 = vector.broadcast %c5_i32 : i32 to vector<1x288xi32>
    %105 = arith.cmpi sge, %89, %104 : vector<1x288xi32>
    %c1_i32_30 = arith.constant 1 : i32
    %c0_i32_31 = arith.constant 0 : i32
    %106 = vector.broadcast %c1_i32_30 : i32 to vector<1x288xi32>
    %107 = vector.broadcast %c0_i32_31 : i32 to vector<1x288xi32>
    %108 = arith.select %105, %106, %107 : vector<1x288xi1>, vector<1x288xi32>
    %c10_i32 = arith.constant 10 : i32
    %109 = vector.broadcast %c10_i32 : i32 to vector<1x288xi32>
    %110 = arith.cmpi sge, %89, %109 : vector<1x288xi32>
    %c1_i32_32 = arith.constant 1 : i32
    %c0_i32_33 = arith.constant 0 : i32
    %111 = vector.broadcast %c1_i32_32 : i32 to vector<1x288xi32>
    %112 = vector.broadcast %c0_i32_33 : i32 to vector<1x288xi32>
    %113 = arith.select %110, %111, %112 : vector<1x288xi1>, vector<1x288xi32>
    %114 = arith.addi %108, %113 : vector<1x288xi32>
    %c15_i32 = arith.constant 15 : i32
    %115 = vector.broadcast %c15_i32 : i32 to vector<1x288xi32>
    %116 = arith.cmpi sge, %89, %115 : vector<1x288xi32>
    %c1_i32_34 = arith.constant 1 : i32
    %c0_i32_35 = arith.constant 0 : i32
    %117 = vector.broadcast %c1_i32_34 : i32 to vector<1x288xi32>
    %118 = vector.broadcast %c0_i32_35 : i32 to vector<1x288xi32>
    %119 = arith.select %116, %117, %118 : vector<1x288xi1>, vector<1x288xi32>
    %120 = arith.addi %114, %119 : vector<1x288xi32>
    %c20_i32 = arith.constant 20 : i32
    %121 = vector.broadcast %c20_i32 : i32 to vector<1x288xi32>
    %122 = arith.cmpi sge, %89, %121 : vector<1x288xi32>
    %c1_i32_36 = arith.constant 1 : i32
    %c0_i32_37 = arith.constant 0 : i32
    %123 = vector.broadcast %c1_i32_36 : i32 to vector<1x288xi32>
    %124 = vector.broadcast %c0_i32_37 : i32 to vector<1x288xi32>
    %125 = arith.select %122, %123, %124 : vector<1x288xi1>, vector<1x288xi32>
    %126 = arith.addi %120, %125 : vector<1x288xi32>
    %c25_i32 = arith.constant 25 : i32
    %127 = vector.broadcast %c25_i32 : i32 to vector<1x288xi32>
    %128 = arith.cmpi sge, %89, %127 : vector<1x288xi32>
    %c1_i32_38 = arith.constant 1 : i32
    %c0_i32_39 = arith.constant 0 : i32
    %129 = vector.broadcast %c1_i32_38 : i32 to vector<1x288xi32>
    %130 = vector.broadcast %c0_i32_39 : i32 to vector<1x288xi32>
    %131 = arith.select %128, %129, %130 : vector<1x288xi1>, vector<1x288xi32>
    %132 = arith.addi %126, %131 : vector<1x288xi32>
    %c30_i32 = arith.constant 30 : i32
    %133 = vector.broadcast %c30_i32 : i32 to vector<1x288xi32>
    %134 = arith.cmpi sge, %89, %133 : vector<1x288xi32>
    %c1_i32_40 = arith.constant 1 : i32
    %c0_i32_41 = arith.constant 0 : i32
    %135 = vector.broadcast %c1_i32_40 : i32 to vector<1x288xi32>
    %136 = vector.broadcast %c0_i32_41 : i32 to vector<1x288xi32>
    %137 = arith.select %134, %135, %136 : vector<1x288xi1>, vector<1x288xi32>
    %138 = arith.addi %132, %137 : vector<1x288xi32>
    %c5_i32_42 = arith.constant 5 : i32
    %139 = vector.broadcast %c5_i32_42 : i32 to vector<1x288xi32>
    %140 = arith.muli %139, %138 : vector<1x288xi32>
    %141 = arith.subi %89, %140 : vector<1x288xi32>
    %c24_i32 = arith.constant 24 : i32
    %142 = vector.broadcast %c24_i32 : i32 to vector<1x288xi32>
    %143 = arith.muli %142, %138 : vector<1x288xi32>
    %c2_i32 = arith.constant 2 : i32
    %144 = vector.broadcast %c2_i32 : i32 to vector<1x288xi32>
    %145 = arith.muli %144, %141 : vector<1x288xi32>
    %146 = arith.addi %143, %145 : vector<1x288xi32>
    %c12_i32 = arith.constant 12 : i32
    %147 = vector.broadcast %c12_i32 : i32 to vector<1x288xi32>
    %148 = arith.muli %147, %100 : vector<1x288xi32>
    %149 = arith.addi %146, %148 : vector<1x288xi32>
    %150 = arith.addi %149, %103 : vector<1x288xi32>
    %c25_i32_43 = arith.constant 25 : i32
    %151 = vector.broadcast %c25_i32_43 : i32 to vector<1x288xi32>
    %152 = arith.cmpi slt, %89, %151 : vector<1x288xi32>
    %153 = tpu.iota {dimensions = array<i32: 0>} : vector<144x288xi32>
    %154 = vector.broadcast %150 : vector<1x288xi32> to vector<144x288xi32>
    %155 = arith.cmpi eq, %153, %154 : vector<144x288xi32>
    %156 = vector.broadcast %152 : vector<1x288xi1> to vector<144x288xi1>
    %157 = arith.andi %155, %156 : vector<144x288xi1>
    %cst_44 = arith.constant 1.000000e+00 : f32
    %cst_45 = arith.constant 0.000000e+00 : f32
    %158 = vector.broadcast %cst_44 : f32 to vector<144x288xf32>
    %159 = vector.broadcast %cst_45 : f32 to vector<144x288xf32>
    %160 = arith.select %157, %158, %159 : vector<144x288xi1>, vector<144x288xf32>
    %cst_46 = arith.constant dense<0.000000e+00> : vector<10x288xf32>
    %161 = tpu.matmul %38, %160, %cst_46 {dimension_numbers = #tpu.dot_dimension_numbers<[1], [0], [0], [1], [0, 0, 1, 1], [], []>} : vector<10x144xf32>, vector<144x288xf32>, vector<10x288xf32> -> vector<10x288xf32>
    %162 = vector.extract_strided_slice %161 {offsets = [0, 0], sizes = [10, 32], strides = [1, 1]} : vector<10x288xf32> to vector<10x32xf32>
    %163 = vector.extract_strided_slice %10 {offsets = [0, 0], sizes = [10, 10], strides = [1, 1]} : vector<10x128xf32> to vector<10x10xf32>
    %cst_47 = arith.constant dense<0.000000e+00> : vector<10x32xf32>
    %164 = tpu.matmul %163, %162, %cst_47 {dimension_numbers = #tpu.dot_dimension_numbers<[1], [0], [0], [1], [0, 0, 1, 1], [], []>} : vector<10x10xf32>, vector<10x32xf32>, vector<10x32xf32> -> vector<10x32xf32>
    %165 = vector.extract_strided_slice %161 {offsets = [0, 32], sizes = [10, 32], strides = [1, 1]} : vector<10x288xf32> to vector<10x32xf32>
    %166 = vector.extract_strided_slice %10 {offsets = [0, 12], sizes = [10, 10], strides = [1, 1]} : vector<10x128xf32> to vector<10x10xf32>
    %cst_48 = arith.constant dense<0.000000e+00> : vector<10x32xf32>
    %167 = tpu.matmul %166, %165, %cst_48 {dimension_numbers = #tpu.dot_dimension_numbers<[1], [0], [0], [1], [0, 0, 1, 1], [], []>} : vector<10x10xf32>, vector<10x32xf32>, vector<10x32xf32> -> vector<10x32xf32>
    %168 = vector.extract_strided_slice %161 {offsets = [0, 64], sizes = [10, 32], strides = [1, 1]} : vector<10x288xf32> to vector<10x32xf32>
    %169 = vector.extract_strided_slice %10 {offsets = [0, 24], sizes = [10, 10], strides = [1, 1]} : vector<10x128xf32> to vector<10x10xf32>
    %cst_49 = arith.constant dense<0.000000e+00> : vector<10x32xf32>
    %170 = tpu.matmul %169, %168, %cst_49 {dimension_numbers = #tpu.dot_dimension_numbers<[1], [0], [0], [1], [0, 0, 1, 1], [], []>} : vector<10x10xf32>, vector<10x32xf32>, vector<10x32xf32> -> vector<10x32xf32>
    %171 = vector.extract_strided_slice %161 {offsets = [0, 96], sizes = [10, 32], strides = [1, 1]} : vector<10x288xf32> to vector<10x32xf32>
    %172 = vector.extract_strided_slice %10 {offsets = [0, 36], sizes = [10, 10], strides = [1, 1]} : vector<10x128xf32> to vector<10x10xf32>
    %cst_50 = arith.constant dense<0.000000e+00> : vector<10x32xf32>
    %173 = tpu.matmul %172, %171, %cst_50 {dimension_numbers = #tpu.dot_dimension_numbers<[1], [0], [0], [1], [0, 0, 1, 1], [], []>} : vector<10x10xf32>, vector<10x32xf32>, vector<10x32xf32> -> vector<10x32xf32>
    %174 = arith.addf %164, %173 : vector<10x32xf32>
    %175 = vector.extract_strided_slice %161 {offsets = [0, 128], sizes = [10, 32], strides = [1, 1]} : vector<10x288xf32> to vector<10x32xf32>
    %176 = vector.extract_strided_slice %10 {offsets = [0, 48], sizes = [10, 10], strides = [1, 1]} : vector<10x128xf32> to vector<10x10xf32>
    %cst_51 = arith.constant dense<0.000000e+00> : vector<10x32xf32>
    %177 = tpu.matmul %176, %175, %cst_51 {dimension_numbers = #tpu.dot_dimension_numbers<[1], [0], [0], [1], [0, 0, 1, 1], [], []>} : vector<10x10xf32>, vector<10x32xf32>, vector<10x32xf32> -> vector<10x32xf32>
    %178 = arith.addf %167, %177 : vector<10x32xf32>
    %179 = vector.extract_strided_slice %161 {offsets = [0, 160], sizes = [10, 32], strides = [1, 1]} : vector<10x288xf32> to vector<10x32xf32>
    %180 = vector.extract_strided_slice %10 {offsets = [0, 60], sizes = [10, 10], strides = [1, 1]} : vector<10x128xf32> to vector<10x10xf32>
    %cst_52 = arith.constant dense<0.000000e+00> : vector<10x32xf32>
    %181 = tpu.matmul %180, %179, %cst_52 {dimension_numbers = #tpu.dot_dimension_numbers<[1], [0], [0], [1], [0, 0, 1, 1], [], []>} : vector<10x10xf32>, vector<10x32xf32>, vector<10x32xf32> -> vector<10x32xf32>
    %182 = arith.addf %170, %181 : vector<10x32xf32>
    %183 = vector.extract_strided_slice %161 {offsets = [0, 192], sizes = [10, 32], strides = [1, 1]} : vector<10x288xf32> to vector<10x32xf32>
    %184 = vector.extract_strided_slice %10 {offsets = [0, 72], sizes = [10, 10], strides = [1, 1]} : vector<10x128xf32> to vector<10x10xf32>
    %cst_53 = arith.constant dense<0.000000e+00> : vector<10x32xf32>
    %185 = tpu.matmul %184, %183, %cst_53 {dimension_numbers = #tpu.dot_dimension_numbers<[1], [0], [0], [1], [0, 0, 1, 1], [], []>} : vector<10x10xf32>, vector<10x32xf32>, vector<10x32xf32> -> vector<10x32xf32>
    %186 = arith.addf %174, %185 : vector<10x32xf32>
    %187 = vector.extract_strided_slice %161 {offsets = [0, 224], sizes = [10, 32], strides = [1, 1]} : vector<10x288xf32> to vector<10x32xf32>
    %188 = vector.extract_strided_slice %10 {offsets = [0, 84], sizes = [10, 10], strides = [1, 1]} : vector<10x128xf32> to vector<10x10xf32>
    %cst_54 = arith.constant dense<0.000000e+00> : vector<10x32xf32>
    %189 = tpu.matmul %188, %187, %cst_54 {dimension_numbers = #tpu.dot_dimension_numbers<[1], [0], [0], [1], [0, 0, 1, 1], [], []>} : vector<10x10xf32>, vector<10x32xf32>, vector<10x32xf32> -> vector<10x32xf32>
    %190 = arith.addf %178, %189 : vector<10x32xf32>
    %191 = vector.extract_strided_slice %161 {offsets = [0, 256], sizes = [10, 32], strides = [1, 1]} : vector<10x288xf32> to vector<10x32xf32>
    %192 = vector.extract_strided_slice %10 {offsets = [0, 96], sizes = [10, 10], strides = [1, 1]} : vector<10x128xf32> to vector<10x10xf32>
    %cst_55 = arith.constant dense<0.000000e+00> : vector<10x32xf32>
    %193 = tpu.matmul %192, %191, %cst_55 {dimension_numbers = #tpu.dot_dimension_numbers<[1], [0], [0], [1], [0, 0, 1, 1], [], []>} : vector<10x10xf32>, vector<10x32xf32>, vector<10x32xf32> -> vector<10x32xf32>
    %194 = arith.addf %182, %193 : vector<10x32xf32>
    %195 = arith.addf %186, %190 : vector<10x32xf32>
    %196 = arith.addf %195, %194 : vector<10x32xf32>
    %197 = vector.extract_strided_slice %196 {offsets = [0, 0], sizes = [10, 25], strides = [1, 1]} : vector<10x32xf32> to vector<10x25xf32>
    %198 = vector.broadcast %6 : vector<10x1xf32> to vector<10x25xf32>
    %199 = arith.addf %197, %198 : vector<10x25xf32>
    %cst_56 = arith.constant 0.000000e+00 : f32
    %200 = vector.broadcast %cst_56 : f32 to vector<10x25xf32>
    %201 = arith.cmpf oge, %199, %200 : vector<10x25xf32>
    %cst_57 = arith.constant 2.000000e-02 : f32
    %202 = vector.broadcast %cst_57 : f32 to vector<10x25xf32>
    %203 = arith.mulf %202, %199 : vector<10x25xf32>
    %204 = arith.select %201, %199, %203 : vector<10x25xi1>, vector<10x25xf32>
    %cst_58 = arith.constant dense<0.000000e+00> : vector<10xf32>
    %205 = vector.multi_reduction <add>, %204, %cst_58 [1] : vector<10x25xf32> to vector<10xf32>
    %206 = vector.shape_cast %205 : vector<10xf32> to vector<10x1xf32>
    %cst_59 = arith.constant 4.000000e-02 : f32
    %207 = vector.broadcast %cst_59 : f32 to vector<10x1xf32>
    %208 = arith.mulf %206, %207 : vector<10x1xf32>
    %209 = vector.broadcast %208 : vector<10x1xf32> to vector<10x25xf32>
    %210 = arith.subf %204, %209 : vector<10x25xf32>
    %211 = arith.mulf %210, %210 : vector<10x25xf32>
    %cst_60 = arith.constant dense<0.000000e+00> : vector<10xf32>
    %212 = vector.multi_reduction <add>, %211, %cst_60 [1] : vector<10x25xf32> to vector<10xf32>
    %213 = vector.shape_cast %212 : vector<10xf32> to vector<10x1xf32>
    %cst_61 = arith.constant 4.000000e-02 : f32
    %214 = vector.broadcast %cst_61 : f32 to vector<10x1xf32>
    %215 = arith.mulf %213, %214 : vector<10x1xf32>
    %cst_62 = arith.constant 9.99999974E-6 : f32
    %216 = vector.broadcast %cst_62 : f32 to vector<10x1xf32>
    %217 = arith.addf %215, %216 : vector<10x1xf32>
    %218 = math.rsqrt %217 : vector<10x1xf32>
    %219 = arith.mulf %7, %218 : vector<10x1xf32>
    %220 = vector.broadcast %219 : vector<10x1xf32> to vector<10x25xf32>
    %221 = arith.mulf %210, %220 : vector<10x25xf32>
    %222 = vector.broadcast %8 : vector<10x1xf32> to vector<10x25xf32>
    %223 = arith.addf %221, %222 : vector<10x25xf32>
    %224 = vector.extract_strided_slice %223 {offsets = [0, 0], sizes = [1, 25], strides = [1, 1]} : vector<10x25xf32> to vector<1x25xf32>
    %c0_63 = arith.constant 0 : index
    %c0_64 = arith.constant 0 : index
    %c0_65 = arith.constant 0 : index
    %225 = vector.load %arg2[%c0_63, %c0_64, %c0_65] : memref<10x25x10xf32, #tpu.memory_space<vmem>>, vector<1x25x10xf32>
    %226 = vector.shape_cast %225 : vector<1x25x10xf32> to vector<25x10xf32>
    %cst_66 = arith.constant dense<0.000000e+00> : vector<1x10xf32>
    %227 = tpu.matmul %224, %226, %cst_66 {dimension_numbers = #tpu.dot_dimension_numbers<[1], [0], [0], [1], [0, 0, 1, 1], [], []>} : vector<1x25xf32>, vector<25x10xf32>, vector<1x10xf32> -> vector<1x10xf32>
    %228 = vector.extract_strided_slice %223 {offsets = [1, 0], sizes = [1, 25], strides = [1, 1]} : vector<10x25xf32> to vector<1x25xf32>
    %c1 = arith.constant 1 : index
    %c0_67 = arith.constant 0 : index
    %c0_68 = arith.constant 0 : index
    %229 = vector.load %arg2[%c1, %c0_67, %c0_68] : memref<10x25x10xf32, #tpu.memory_space<vmem>>, vector<1x25x10xf32>
    %230 = vector.shape_cast %229 : vector<1x25x10xf32> to vector<25x10xf32>
    %cst_69 = arith.constant dense<0.000000e+00> : vector<1x10xf32>
    %231 = tpu.matmul %228, %230, %cst_69 {dimension_numbers = #tpu.dot_dimension_numbers<[1], [0], [0], [1], [0, 0, 1, 1], [], []>} : vector<1x25xf32>, vector<25x10xf32>, vector<1x10xf32> -> vector<1x10xf32>
    %232 = vector.extract_strided_slice %223 {offsets = [2, 0], sizes = [1, 25], strides = [1, 1]} : vector<10x25xf32> to vector<1x25xf32>
    %c2 = arith.constant 2 : index
    %c0_70 = arith.constant 0 : index
    %c0_71 = arith.constant 0 : index
    %233 = vector.load %arg2[%c2, %c0_70, %c0_71] : memref<10x25x10xf32, #tpu.memory_space<vmem>>, vector<1x25x10xf32>
    %234 = vector.shape_cast %233 : vector<1x25x10xf32> to vector<25x10xf32>
    %cst_72 = arith.constant dense<0.000000e+00> : vector<1x10xf32>
    %235 = tpu.matmul %232, %234, %cst_72 {dimension_numbers = #tpu.dot_dimension_numbers<[1], [0], [0], [1], [0, 0, 1, 1], [], []>} : vector<1x25xf32>, vector<25x10xf32>, vector<1x10xf32> -> vector<1x10xf32>
    %236 = vector.extract_strided_slice %223 {offsets = [3, 0], sizes = [1, 25], strides = [1, 1]} : vector<10x25xf32> to vector<1x25xf32>
    %c3 = arith.constant 3 : index
    %c0_73 = arith.constant 0 : index
    %c0_74 = arith.constant 0 : index
    %237 = vector.load %arg2[%c3, %c0_73, %c0_74] : memref<10x25x10xf32, #tpu.memory_space<vmem>>, vector<1x25x10xf32>
    %238 = vector.shape_cast %237 : vector<1x25x10xf32> to vector<25x10xf32>
    %cst_75 = arith.constant dense<0.000000e+00> : vector<1x10xf32>
    %239 = tpu.matmul %236, %238, %cst_75 {dimension_numbers = #tpu.dot_dimension_numbers<[1], [0], [0], [1], [0, 0, 1, 1], [], []>} : vector<1x25xf32>, vector<25x10xf32>, vector<1x10xf32> -> vector<1x10xf32>
    %240 = vector.extract_strided_slice %223 {offsets = [4, 0], sizes = [1, 25], strides = [1, 1]} : vector<10x25xf32> to vector<1x25xf32>
    %c4 = arith.constant 4 : index
    %c0_76 = arith.constant 0 : index
    %c0_77 = arith.constant 0 : index
    %241 = vector.load %arg2[%c4, %c0_76, %c0_77] : memref<10x25x10xf32, #tpu.memory_space<vmem>>, vector<1x25x10xf32>
    %242 = vector.shape_cast %241 : vector<1x25x10xf32> to vector<25x10xf32>
    %cst_78 = arith.constant dense<0.000000e+00> : vector<1x10xf32>
    %243 = tpu.matmul %240, %242, %cst_78 {dimension_numbers = #tpu.dot_dimension_numbers<[1], [0], [0], [1], [0, 0, 1, 1], [], []>} : vector<1x25xf32>, vector<25x10xf32>, vector<1x10xf32> -> vector<1x10xf32>
    %244 = vector.extract_strided_slice %223 {offsets = [5, 0], sizes = [1, 25], strides = [1, 1]} : vector<10x25xf32> to vector<1x25xf32>
    %c5 = arith.constant 5 : index
    %c0_79 = arith.constant 0 : index
    %c0_80 = arith.constant 0 : index
    %245 = vector.load %arg2[%c5, %c0_79, %c0_80] : memref<10x25x10xf32, #tpu.memory_space<vmem>>, vector<1x25x10xf32>
    %246 = vector.shape_cast %245 : vector<1x25x10xf32> to vector<25x10xf32>
    %cst_81 = arith.constant dense<0.000000e+00> : vector<1x10xf32>
    %247 = tpu.matmul %244, %246, %cst_81 {dimension_numbers = #tpu.dot_dimension_numbers<[1], [0], [0], [1], [0, 0, 1, 1], [], []>} : vector<1x25xf32>, vector<25x10xf32>, vector<1x10xf32> -> vector<1x10xf32>
    %248 = vector.extract_strided_slice %223 {offsets = [6, 0], sizes = [1, 25], strides = [1, 1]} : vector<10x25xf32> to vector<1x25xf32>
    %c6 = arith.constant 6 : index
    %c0_82 = arith.constant 0 : index
    %c0_83 = arith.constant 0 : index
    %249 = vector.load %arg2[%c6, %c0_82, %c0_83] : memref<10x25x10xf32, #tpu.memory_space<vmem>>, vector<1x25x10xf32>
    %250 = vector.shape_cast %249 : vector<1x25x10xf32> to vector<25x10xf32>
    %cst_84 = arith.constant dense<0.000000e+00> : vector<1x10xf32>
    %251 = tpu.matmul %248, %250, %cst_84 {dimension_numbers = #tpu.dot_dimension_numbers<[1], [0], [0], [1], [0, 0, 1, 1], [], []>} : vector<1x25xf32>, vector<25x10xf32>, vector<1x10xf32> -> vector<1x10xf32>
    %252 = vector.extract_strided_slice %223 {offsets = [7, 0], sizes = [1, 25], strides = [1, 1]} : vector<10x25xf32> to vector<1x25xf32>
    %c7 = arith.constant 7 : index
    %c0_85 = arith.constant 0 : index
    %c0_86 = arith.constant 0 : index
    %253 = vector.load %arg2[%c7, %c0_85, %c0_86] : memref<10x25x10xf32, #tpu.memory_space<vmem>>, vector<1x25x10xf32>
    %254 = vector.shape_cast %253 : vector<1x25x10xf32> to vector<25x10xf32>
    %cst_87 = arith.constant dense<0.000000e+00> : vector<1x10xf32>
    %255 = tpu.matmul %252, %254, %cst_87 {dimension_numbers = #tpu.dot_dimension_numbers<[1], [0], [0], [1], [0, 0, 1, 1], [], []>} : vector<1x25xf32>, vector<25x10xf32>, vector<1x10xf32> -> vector<1x10xf32>
    %256 = vector.extract_strided_slice %223 {offsets = [8, 0], sizes = [1, 25], strides = [1, 1]} : vector<10x25xf32> to vector<1x25xf32>
    %c8 = arith.constant 8 : index
    %c0_88 = arith.constant 0 : index
    %c0_89 = arith.constant 0 : index
    %257 = vector.load %arg2[%c8, %c0_88, %c0_89] : memref<10x25x10xf32, #tpu.memory_space<vmem>>, vector<1x25x10xf32>
    %258 = vector.shape_cast %257 : vector<1x25x10xf32> to vector<25x10xf32>
    %cst_90 = arith.constant dense<0.000000e+00> : vector<1x10xf32>
    %259 = tpu.matmul %256, %258, %cst_90 {dimension_numbers = #tpu.dot_dimension_numbers<[1], [0], [0], [1], [0, 0, 1, 1], [], []>} : vector<1x25xf32>, vector<25x10xf32>, vector<1x10xf32> -> vector<1x10xf32>
    %260 = vector.extract_strided_slice %223 {offsets = [9, 0], sizes = [1, 25], strides = [1, 1]} : vector<10x25xf32> to vector<1x25xf32>
    %c9 = arith.constant 9 : index
    %c0_91 = arith.constant 0 : index
    %c0_92 = arith.constant 0 : index
    %261 = vector.load %arg2[%c9, %c0_91, %c0_92] : memref<10x25x10xf32, #tpu.memory_space<vmem>>, vector<1x25x10xf32>
    %262 = vector.shape_cast %261 : vector<1x25x10xf32> to vector<25x10xf32>
    %cst_93 = arith.constant dense<0.000000e+00> : vector<1x10xf32>
    %263 = tpu.matmul %260, %262, %cst_93 {dimension_numbers = #tpu.dot_dimension_numbers<[1], [0], [0], [1], [0, 0, 1, 1], [], []>} : vector<1x25xf32>, vector<25x10xf32>, vector<1x10xf32> -> vector<1x10xf32>
    %264 = arith.addf %227, %231 : vector<1x10xf32>
    %265 = arith.addf %235, %239 : vector<1x10xf32>
    %266 = arith.addf %243, %247 : vector<1x10xf32>
    %267 = arith.addf %251, %255 : vector<1x10xf32>
    %268 = arith.addf %259, %263 : vector<1x10xf32>
    %269 = arith.addf %264, %265 : vector<1x10xf32>
    %270 = arith.addf %266, %267 : vector<1x10xf32>
    %271 = arith.addf %269, %270 : vector<1x10xf32>
    %272 = arith.addf %271, %268 : vector<1x10xf32>
    %273 = arith.addf %272, %9 : vector<1x10xf32>
    %274 = math.absf %273 : vector<1x10xf32>
    %cst_94 = arith.constant 0.000000e+00 : f32
    %275 = vector.broadcast %cst_94 : f32 to vector<1x10xf32>
    %276 = arith.subf %275, %274 : vector<1x10xf32>
    %277 = math.exp %276 : vector<1x10xf32>
    %cst_95 = arith.constant 1.000000e+00 : f32
    %278 = vector.broadcast %cst_95 : f32 to vector<1x10xf32>
    %279 = arith.addf %278, %277 : vector<1x10xf32>
    %280 = tpu.reciprocal %279 {approx = true} : vector<1x10xf32> -> vector<1x10xf32>
    %cst_96 = arith.constant 0.000000e+00 : f32
    %281 = vector.broadcast %cst_96 : f32 to vector<1x10xf32>
    %282 = arith.cmpf oge, %273, %281 : vector<1x10xf32>
    %283 = arith.mulf %277, %280 : vector<1x10xf32>
    %284 = arith.select %282, %280, %283 : vector<1x10xi1>, vector<1x10xf32>
    %c0_97 = arith.constant 0 : index
    %c0_98 = arith.constant 0 : index
    %285 = vector.load %arg3[%c0_97, %c0_98] : memref<1x10xf32, #tpu.memory_space<vmem>>, vector<1x10xf32>
    tpu.vector_store %arg3[%c0_97, %c0_98], %284 {strides = array<i32>} : memref<1x10xf32, #tpu.memory_space<vmem>>, vector<1x10xf32>,
    return
  }
}

</mosaic_0001>

<llo_original>
// kernel: classifier_forward.1
$region0: #{classifier_forward.1}
  #allocation0 [shape = 'u32[]', space=smem, size = 0x4, offset = 0x4, fixed_abs, tag = 'smem constant byte address 0x4 - core index']
  #allocation1 [shape = 'u32[144,128]{1,0:T(1,128)}', space=vmem, size = 0x12000, scoped, tag = 'internal scratch']
  %s0 = inlined_call_operand.vmem [shape: f32[25,144], index: 0, kind: input, shape index: {}]
  %s1 = inlined_call_operand.vmem [shape: f32[32,128], index: 1, kind: input, shape index: {}]
  %s2 = inlined_call_operand.vmem [shape: f32[10,25,10], index: 2, kind: input, shape index: {}]
  %s3 = inlined_call_operand.hbm [shape: f32[1,10], index: 3, kind: output, shape index: {}]
  %s4 = sld [smem:[#allocation0]]
  $region22: #{classifier_forward.1} parent=0
    _
  %s6 = ssub.s32 1, %s4
  %s7 = scalar_select 0, %s6, %s4
  $region1: #{classifier_forward.1} parent=0
    #allocation2 [shape = 'u8[512]{0}', space=vmem, size = 0x400, scoped, tag = 'output window, operand 0, single buffered']
    #allocation3 [shape = 's32[1]{0}', space=sflag, size = 0x4, scoped, tag = 'scoped memory for classifier_forward.1']
    %8 = vsyncpa [#allocation3], 0
    // Predicated region
    $region2: #{classifier_forward.1} parent=1 // pred_check
      _
    $region3: #{classifier_forward.1} parent=1 // pred_check_branch
      %10 = sbr.rel (0) target = $region5
    $region4: #{classifier_forward.1} parent=1 // pred_region
      _
    $region5: #{classifier_forward.1} parent=1 // pred_fallthru
      _
    // Predicated region
    $region6: #{classifier_forward.1} parent=1 // pred_check
      _
    $region7: #{classifier_forward.1} parent=1 // pred_check_branch
      %12 = sbr.rel (0) target = $region9
    $region8: #{classifier_forward.1} parent=1 // pred_region
      _
    $region9: #{classifier_forward.1} parent=1 // pred_fallthru
      _
    // Predicated region
    $region10: #{classifier_forward.1} parent=1 // pred_check
      _
    $region11: #{classifier_forward.1} parent=1 // pred_check_branch
      %14 = sbr.rel (0) target = $region13
    $region12: #{classifier_forward.1} parent=1 // pred_region
      _
    $region13: #{classifier_forward.1} parent=1 // pred_fallthru
      _
    %v15 = vld [vmem:[%s1] sm:$0xff]
    %v16 = vld [vmem:[%s1 + $0x8] sm:$0xff]
    %v17 = vld [vmem:[%s1 + $0x10] sm:$0xff]
    %v18 = vld [vmem:[%s1 + $0x18] sm:$0xff]
    %v19 = vld [vmem:[%s0] sm:$0xff]
    %v20 = vld [vmem:[%s0 + $0x8] sm:$0xff]
    %v21 = vld [vmem:[%s0 + $0x10] sm:$0xff]
    %v22 = vld [vmem:[%s0 + $0x18] sm:$0xff]
    %v23 = vld [vmem:[%s0 + $0x20] sm:$0xff]
    %v24 = vld [vmem:[%s0 + $0x28] sm:$0xff]
    %v25 = vld [vmem:[%s0 + $0x30] sm:$0x1]
    %v26 = vld [vmem:[%s0 + $0x38] sm:$0x1]
    %28 = vset.pattern.permute.xlu0 32
    %29 = vperm.xlu0 %28, %v15
    %v30 = vpop.permute.xlu0 %29
    %33 = vset.pattern.permute.xlu0 32
    %34 = vperm.xlu0 %33, %v16
    %v35 = vpop.permute.xlu0 %34
    %vm37 = vcmask 203776
    %v38 = vsel %vm37, %v15, 0
    %v40 = vsel %vm37, %v16, 0
    %vm42 = vcmask 1040384
    %v44 = vsel %vm42, %v25, 0
    %v47 = vsel %vm42, %v26, 0
    %49 = vmatprep.subr.mxu0 0.0
    %50 = vmatpush1.msra.mxu0 0.0
    %51 = vmatprep.subr.mxu0 0.0
    %52 = vmatpush1.msra.mxu0 0.0
    %53 = vmatprep.subr.mxu0 0.0
    %54 = vmatpush1.msra.mxu0 0.0
    %55 = vmatprep.subr.mxu0 0.0
    %56 = vmatpush1.msra.mxu0 0.0
    %57 = vmatprep.subr.mxu0 0.0
    %58 = vmatpush1.msra.mxu0 0.0
    %59 = vmatprep.subr.mxu0 0.0
    %60 = vmatpush1.msra.mxu0 0.0
    %61 = vmatprep.subr.mxu0 0.0
    %62 = vmatpush1.msra.mxu0 0.0
    %63 = vmatprep.subr.mxu0 0.0
    %64 = vmatpush1.msra.mxu0 0.0
    %65 = vmatprep.subr.mxu0 0.0
    %66 = vmatpush1.msra.mxu0 0.0
    %67 = vmatprep.subr.mxu0 0.0
    %68 = vmatpush1.msra.mxu0 0.0
    %69 = vmatprep.subr.mxu0 0.0
    %70 = vmatpush1.msra.mxu0 0.0
    %71 = vmatprep.subr.mxu0 0.0
    %72 = vmatpush1.msra.mxu0 0.0
    %73 = vmatprep.subr.mxu0 %v47
    %74 = vmatpush1.msra.mxu0 %v44
    %75 = vmatprep.subr.mxu0 %v24
    %76 = vmatpush1.msra.mxu0 %v23
    %77 = vmatprep.subr.mxu0 %v22
    %78 = vmatpush1.msra.mxu0 %v21
    %79 = vmatprep.subr.mxu0 %v20
    %80 = vmatpush1.msra.mxu0 %v19
    %81 = vmatprep.subr.mxu0 0.0
    %82 = vmatpush2.msra.mxu0 0.0
    %83 = vmatprep.subr.mxu0 0.0
    %84 = vmatpush2.msra.mxu0 0.0
    %85 = vmatprep.subr.mxu0 0.0
    %86 = vmatpush2.msra.mxu0 0.0
    %87 = vmatprep.subr.mxu0 0.0
    %88 = vmatpush2.msra.mxu0 0.0
    %89 = vmatprep.subr.mxu0 0.0
    %90 = vmatpush2.msra.mxu0 0.0
    %91 = vmatprep.subr.mxu0 0.0
    %92 = vmatpush2.msra.mxu0 0.0
    %93 = vmatprep.subr.mxu0 0.0
    %94 = vmatpush2.msra.mxu0 0.0
    %95 = vmatprep.subr.mxu0 0.0
    %96 = vmatpush2.msra.mxu0 0.0
    %97 = vmatprep.subr.mxu0 0.0
    %98 = vmatpush2.msra.mxu0 0.0
    %99 = vmatprep.subr.mxu0 0.0
    %100 = vmatpush2.msra.mxu0 0.0
    %101 = vmatprep.subr.mxu0 0.0
    %102 = vmatpush2.msra.mxu0 0.0
    %103 = vmatprep.subr.mxu0 0.0
    %104 = vmatpush2.msra.mxu0 0.0
    %105 = vmatprep.subr.mxu0 0.0
    %106 = vmatpush2.msra.mxu0 0.0
    %107 = vmatprep.subr.mxu0 0.0
    %108 = vmatpush2.msra.mxu0 0.0
    %109 = vmatprep.subr.mxu0 0.0
    %110 = vmatpush2.msra.mxu0 0.0
    %111 = vmatprep.subr.mxu0 0.0
    %112 = vmatpush2.msra.mxu0 0.0
    %113 = vmatprep.mubr.f32.mxu0 0.0
    %114 = vmatmul.mubr.f32.gmra.mxu0 %v38
    %v115 = vpop.f32.mrf.mxu0
    %v116 = vadd.f32 %v30, %v115
    %v117 = vpop.f32.mrf.mxu0
    %v118 = vadd.f32 %v30, %v117
    %119 = vmatprep.mubr.f32.mxu0 0.0
    %120 = vmatmul.mubr.f32.gmra.mxu0 %v40
    %v121 = vpop.f32.mrf.mxu0
    %v122 = vadd.f32 %v35, %v121
    %v123 = vpop.f32.mrf.mxu0
    %v124 = vadd.f32 %v35, %v123
    %125 = vdwg.mxu0
    %vm126 = vcmp.ge.f32.partialorder %v116, 0.0
    %vm127 = vcmp.ge.f32.partialorder %v118, 0.0
    %vm128 = vcmp.ge.f32.partialorder %v122, 0.0
    %vm129 = vcmp.ge.f32.partialorder %v124, 0.0
    %v130 = vmul.f32 %v116, 0.02
    %v131 = vmul.f32 %v118, 0.02
    %v132 = vmul.f32 %v122, 0.02
    %v133 = vmul.f32 %v124, 0.02
    %v134 = vsel %vm126, %v116, %v130
    %v135 = vsel %vm127, %v118, %v131
    %v136 = vsel %vm128, %v122, %v132
    %v137 = vsel %vm129, %v124, %v133
    %vm138 = vcmask 130048
    %v139 = vsel %vm138, %v135, 0.0
    %v140 = vadd.f32 %v134, %v139
    %141 = vadd.xlane.f32.xlu0 %v140
    %v142 = vpop.xlane.xlu0 %141
    %vm143 = vcmask 1041408
    %v144 = vsel %vm143, %v136, 0.0
    %vm145 = vcmask 123904
    %v146 = vsel %vm145, %v137, 0.0
    %v147 = vadd.f32 %v144, %v146
    %148 = vadd.xlane.f32.xlu0 %v147
    %v149 = vpop.xlane.xlu0 %148
    %v150 = vmul.f32 %v142, 0.0069444445
    %v151 = vmul.f32 %v149, 0.0069444445
    %v152 = vsub.f32 %v134, %v150
    %v153 = vsub.f32 %v135, %v150
    %v154 = vsub.f32 %v136, %v151
    %v155 = vsub.f32 %v137, %v151
    %v156 = vmul.f32 %v152, %v152
    %v157 = vmul.f32 %v153, %v153
    %v158 = vmul.f32 %v154, %v154
    %v159 = vmul.f32 %v155, %v155
    %v160 = vsel %vm138, %v157, 0.0
    %v161 = vadd.f32 %v156, %v160
    %162 = vadd.xlane.f32.xlu0 %v161
    %v163 = vpop.xlane.xlu0 %162
    %v164 = vsel %vm143, %v158, 0.0
    %v165 = vsel %vm145, %v159, 0.0
    %v166 = vadd.f32 %v164, %v165
    %167 = vadd.xlane.f32.xlu0 %v166
    %v168 = vpop.xlane.xlu0 %167
    %v169 = vmul.f32 %v163, 0.0069444445
    %v170 = vmul.f32 %v168, 0.0069444445
    %v171 = vadd.f32 %v169, 1e-05
    %v172 = vadd.f32 %v170, 1e-05
    %v173 = vrsqrt.pop %v171
    %v174 = vrsqrt.pop %v172
    %v175 = vmul.f32 %v15, %v173
    %v176 = vmul.f32 %v16, %v174
    %178 = vset.pattern.permute.xlu0 33
    %179 = vperm.xlu0 %178, %v175
    %v180 = vpop.permute.xlu0 %179
    %183 = vset.pattern.permute.xlu0 33
    %184 = vperm.xlu0 %183, %v176
    %v185 = vpop.permute.xlu0 %184
    %v187 = vmul.f32 %v152, %v180
    %v188 = vmul.f32 %v153, %v180
    %v189 = vmul.f32 %v154, %v185
    %v190 = vmul.f32 %v155, %v185
    %191 = vset.pattern.permute.xlu0 34
    %192 = vperm.xlu0 %191, %v15
    %v193 = vpop.permute.xlu0 %192
    %195 = vset.pattern.permute.xlu0 34
    %196 = vperm.xlu0 %195, %v16
    %v197 = vpop.permute.xlu0 %196
    %v199 = vadd.f32 %v187, %v193
    %v200 = vadd.f32 %v188, %v193
    %v201 = vadd.f32 %v189, %v197
    %v202 = vadd.f32 %v190, %v197
    %v203 = vlaneseq
    %v204 = vand.u32 %v203, 127
    %v205 = vadd.s32 %v204, 128
    %v206 = vadd.s32 %v204, 256
    %vm207 = vcmp.ge.s32.totalorder %v204, 32
    %vm208 = vcmp.ge.s32.totalorder %v205, 32
    %vm209 = vcmp.ge.s32.totalorder %v206, 32
    %v210 = vsel %vm207, 1, 0
    %v211 = vsel %vm208, 1, 0
    %v212 = vsel %vm209, 1, 0
    %vm213 = vcmp.ge.s32.totalorder %v204, 64
    %vm214 = vcmp.ge.s32.totalorder %v205, 64
    %vm215 = vcmp.ge.s32.totalorder %v206, 64
    %v216 = vsel %vm213, 1, 0
    %v217 = vsel %vm214, 1, 0
    %v218 = vsel %vm215, 1, 0
    %v219 = vadd.s32 %v210, %v216
    %v220 = vadd.s32 %v211, %v217
    %v221 = vadd.s32 %v212, %v218
    %vm222 = vcmp.ge.s32.totalorder %v204, 96
    %vm223 = vcmp.ge.s32.totalorder %v205, 96
    %vm224 = vcmp.ge.s32.totalorder %v206, 96
    %v225 = vsel %vm222, 1, 0
    %v226 = vsel %vm223, 1, 0
    %v227 = vsel %vm224, 1, 0
    %v228 = vadd.s32 %v219, %v225
    %v229 = vadd.s32 %v220, %v226
    %v230 = vadd.s32 %v221, %v227
    %vm231 = vcmp.ge.s32.totalorder %v204, 128
    %vm232 = vcmp.ge.s32.totalorder %v205, 128
    %vm233 = vcmp.ge.s32.totalorder %v206, 128
    %v234 = vsel %vm231, 1, 0
    %v235 = vsel %vm232, 1, 0
    %v236 = vsel %vm233, 1, 0
    %v237 = vadd.s32 %v228, %v234
    %v238 = vadd.s32 %v229, %v235
    %v239 = vadd.s32 %v230, %v236
    %vm240 = vcmp.ge.s32.totalorder %v204, 160
    %vm241 = vcmp.ge.s32.totalorder %v205, 160
    %vm242 = vcmp.ge.s32.totalorder %v206, 160
    %v243 = vsel %vm240, 1, 0
    %v244 = vsel %vm241, 1, 0
    %v245 = vsel %vm242, 1, 0
    %v246 = vadd.s32 %v237, %v243
    %v247 = vadd.s32 %v238, %v244
    %v248 = vadd.s32 %v239, %v245
    %vm249 = vcmp.ge.s32.totalorder %v204, 192
    %vm250 = vcmp.ge.s32.totalorder %v205, 192
    %vm251 = vcmp.ge.s32.totalorder %v206, 192
    %v252 = vsel %vm249, 1, 0
    %v253 = vsel %vm250, 1, 0
    %v254 = vsel %vm251, 1, 0
    %v255 = vadd.s32 %v246, %v252
    %v256 = vadd.s32 %v247, %v253
    %v257 = vadd.s32 %v248, %v254
    %vm258 = vcmp.ge.s32.totalorder %v204, 224
    %vm259 = vcmp.ge.s32.totalorder %v205, 224
    %vm260 = vcmp.ge.s32.totalorder %v206, 224
    %v261 = vsel %vm258, 1, 0
    %v262 = vsel %vm259, 1, 0
    %v263 = vsel %vm260, 1, 0
    %v264 = vadd.s32 %v255, %v261
    %v265 = vadd.s32 %v256, %v262
    %v266 = vadd.s32 %v257, %v263
    %vm267 = vcmp.ge.s32.totalorder %v204, 256
    %vm268 = vcmp.ge.s32.totalorder %v205, 256
    %vm269 = vcmp.ge.s32.totalorder %v206, 256
    %v270 = vsel %vm267, 1, 0
    %v271 = vsel %vm268, 1, 0
    %v272 = vsel %vm269, 1, 0
    %v273 = vadd.s32 %v264, %v270
    %v274 = vadd.s32 %v265, %v271
    %v275 = vadd.s32 %v266, %v272
    %v276 = vmul.u32 %v273, 32
    %v277 = vmul.u32 %v274, 32
    %v278 = vmul.u32 %v275, 32
    %v279 = vsub.s32 %v204, %v276
    %v280 = vsub.s32 %v205, %v277
    %v281 = vsub.s32 %v206, %v278
    %vm282 = vcmp.ge.s32.totalorder %v273, 3
    %vm283 = vcmp.ge.s32.totalorder %v274, 3
    %vm284 = vcmp.ge.s32.totalorder %v275, 3
    %v285 = vsel %vm282, 1, 0
    %v286 = vsel %vm283, 1, 0
    %v287 = vsel %vm284, 1, 0
    %vm288 = vcmp.ge.s32.totalorder %v273, 6
    %vm289 = vcmp.ge.s32.totalorder %v274, 6
    %vm290 = vcmp.ge.s32.totalorder %v275, 6
    %v291 = vsel %vm288, 1, 0
    %v292 = vsel %vm289, 1, 0
    %v293 = vsel %vm290, 1, 0
    %v294 = vadd.s32 %v285, %v291
    %v295 = vadd.s32 %v286, %v292
    %v296 = vadd.s32 %v287, %v293
    %v297 = vmul.u32 %v294, 3
    %v298 = vmul.u32 %v295, 3
    %v299 = vmul.u32 %v296, 3
    %v300 = vsub.s32 %v273, %v297
    %v301 = vsub.s32 %v274, %v298
    %v302 = vsub.s32 %v275, %v299
    %vm303 = vcmp.ge.s32.totalorder %v279, 5
    %vm304 = vcmp.ge.s32.totalorder %v280, 5
    %vm305 = vcmp.ge.s32.totalorder %v281, 5
    %v306 = vsel %vm303, 1, 0
    %v307 = vsel %vm304, 1, 0
    %v308 = vsel %vm305, 1, 0
    %vm309 = vcmp.ge.s32.totalorder %v279, 10
    %vm310 = vcmp.ge.s32.totalorder %v280, 10
    %vm311 = vcmp.ge.s32.totalorder %v281, 10
    %v312 = vsel %vm309, 1, 0
    %v313 = vsel %vm310, 1, 0
    %v314 = vsel %vm311, 1, 0
    %v315 = vadd.s32 %v306, %v312
    %v316 = vadd.s32 %v307, %v313
    %v317 = vadd.s32 %v308, %v314
    %vm318 = vcmp.ge.s32.totalorder %v279, 15
    %vm319 = vcmp.ge.s32.totalorder %v280, 15
    %vm320 = vcmp.ge.s32.totalorder %v281, 15
    %v321 = vsel %vm318, 1, 0
    %v322 = vsel %vm319, 1, 0
    %v323 = vsel %vm320, 1, 0
    %v324 = vadd.s32 %v315, %v321
    %v325 = vadd.s32 %v316, %v322
    %v326 = vadd.s32 %v317, %v323
    %vm327 = vcmp.ge.s32.totalorder %v279, 20
    %vm328 = vcmp.ge.s32.totalorder %v280, 20
    %vm329 = vcmp.ge.s32.totalorder %v281, 20
    %v330 = vsel %vm327, 1, 0
    %v331 = vsel %vm328, 1, 0
    %v332 = vsel %vm329, 1, 0
    %v333 = vadd.s32 %v324, %v330
    %v334 = vadd.s32 %v325, %v331
    %v335 = vadd.s32 %v326, %v332
    %vm336 = vcmp.ge.s32.totalorder %v279, 25
    %vm337 = vcmp.ge.s32.totalorder %v280, 25
    %vm338 = vcmp.ge.s32.totalorder %v281, 25
    %v339 = vsel %vm336, 1, 0
    %v340 = vsel %vm337, 1, 0
    %v341 = vsel %vm338, 1, 0
    %v342 = vadd.s32 %v333, %v339
    %v343 = vadd.s32 %v334, %v340
    %v344 = vadd.s32 %v335, %v341
    %vm345 = vcmp.ge.s32.totalorder %v279, 30
    %vm346 = vcmp.ge.s32.totalorder %v280, 30
    %vm347 = vcmp.ge.s32.totalorder %v281, 30
    %v348 = vsel %vm345, 1, 0
    %v349 = vsel %vm346, 1, 0
    %v350 = vsel %vm347, 1, 0
    %v351 = vadd.s32 %v342, %v348
    %v352 = vadd.s32 %v343, %v349
    %v353 = vadd.s32 %v344, %v350
    %v354 = vmul.u32 %v351, 5
    %v355 = vmul.u32 %v352, 5
    %v356 = vmul.u32 %v353, 5
    %v357 = vsub.s32 %v279, %v354
    %v358 = vsub.s32 %v280, %v355
    %v359 = vsub.s32 %v281, %v356
    %v360 = vmul.u32 %v351, 24
    %v361 = vmul.u32 %v352, 24
    %v362 = vmul.u32 %v353, 24
    %v363 = vmul.u32 %v357, 2
    %v364 = vmul.u32 %v358, 2
    %v365 = vmul.u32 %v359, 2
    %v366 = vadd.s32 %v360, %v363
    %v367 = vadd.s32 %v361, %v364
    %v368 = vadd.s32 %v362, %v365
    %v369 = vmul.u32 %v294, 12
    %v370 = vmul.u32 %v295, 12
    %v371 = vmul.u32 %v296, 12
    %v372 = vadd.s32 %v366, %v369
    %v373 = vadd.s32 %v367, %v370
    %v374 = vadd.s32 %v368, %v371
    %v375 = vadd.s32 %v372, %v300
    %v376 = vadd.s32 %v373, %v301
    %v377 = vadd.s32 %v374, %v302
    %vm378 = vcmp.lt.s32.totalorder %v279, 25
    %vm379 = vcmp.lt.s32.totalorder %v280, 25
    %vm380 = vcmp.lt.s32.totalorder %v281, 25
    %v381 = vlaneseq
    %v382 = vshrl.u32 %v381, 7
    %v383 = vadd.s32 %v382, 8
    %v384 = vadd.s32 %v382, 16
    %v385 = vadd.s32 %v382, 24
    %v386 = vadd.s32 %v382, 32
    %v387 = vadd.s32 %v382, 40
    %v388 = vadd.s32 %v382, 48
    %v389 = vadd.s32 %v382, 56
    %v390 = vadd.s32 %v382, 64
    %v391 = vadd.s32 %v382, 72
    %v392 = vadd.s32 %v382, 80
    %v393 = vadd.s32 %v382, 88
    %v394 = vadd.s32 %v382, 96
    %v395 = vadd.s32 %v382, 104
    %v396 = vadd.s32 %v382, 112
    %v397 = vadd.s32 %v382, 120
    %v398 = vadd.s32 %v382, 128
    %v399 = vadd.s32 %v382, 136
    %vm400 = vcmp.eq.s32.totalorder %v382, %v375
    %vm401 = vcmp.eq.s32.totalorder %v382, %v376
    %vm402 = vcmp.eq.s32.totalorder %v382, %v377
    %vm403 = vcmp.eq.s32.totalorder %v383, %v375
    %vm404 = vcmp.eq.s32.totalorder %v383, %v376
    %vm405 = vcmp.eq.s32.totalorder %v383, %v377
    %vm406 = vcmp.eq.s32.totalorder %v384, %v375
    %vm407 = vcmp.eq.s32.totalorder %v384, %v376
    %vm408 = vcmp.eq.s32.totalorder %v384, %v377
    %vm409 = vcmp.eq.s32.totalorder %v385, %v375
    %vm410 = vcmp.eq.s32.totalorder %v385, %v376
    %vm411 = vcmp.eq.s32.totalorder %v385, %v377
    %vm412 = vcmp.eq.s32.totalorder %v386, %v375
    %vm413 = vcmp.eq.s32.totalorder %v386, %v376
    %vm414 = vcmp.eq.s32.totalorder %v386, %v377
    %vm415 = vcmp.eq.s32.totalorder %v387, %v375
    %vm416 = vcmp.eq.s32.totalorder %v387, %v376
    %vm417 = vcmp.eq.s32.totalorder %v387, %v377
    %vm418 = vcmp.eq.s32.totalorder %v388, %v375
    %vm419 = vcmp.eq.s32.totalorder %v388, %v376
    %vm420 = vcmp.eq.s32.totalorder %v388, %v377
    %vm421 = vcmp.eq.s32.totalorder %v389, %v375
    %vm422 = vcmp.eq.s32.totalorder %v389, %v376
    %vm423 = vcmp.eq.s32.totalorder %v389, %v377
    %vm424 = vcmp.eq.s32.totalorder %v390, %v375
    %vm425 = vcmp.eq.s32.totalorder %v390, %v376
    %vm426 = vcmp.eq.s32.totalorder %v390, %v377
    %vm427 = vcmp.eq.s32.totalorder %v391, %v375
    %vm428 = vcmp.eq.s32.totalorder %v391, %v376
    %vm429 = vcmp.eq.s32.totalorder %v391, %v377
    %vm430 = vcmp.eq.s32.totalorder %v392, %v375
    %vm431 = vcmp.eq.s32.totalorder %v392, %v376
    %vm432 = vcmp.eq.s32.totalorder %v392, %v377
    %vm433 = vcmp.eq.s32.totalorder %v393, %v375
    %vm434 = vcmp.eq.s32.totalorder %v393, %v376
    %vm435 = vcmp.eq.s32.totalorder %v393, %v377
    %vm436 = vcmp.eq.s32.totalorder %v394, %v375
    %vm437 = vcmp.eq.s32.totalorder %v394, %v376
    %vm438 = vcmp.eq.s32.totalorder %v394, %v377
    %vm439 = vcmp.eq.s32.totalorder %v395, %v375
    %vm440 = vcmp.eq.s32.totalorder %v395, %v376
    %vm441 = vcmp.eq.s32.totalorder %v395, %v377
    %vm442 = vcmp.eq.s32.totalorder %v396, %v375
    %vm443 = vcmp.eq.s32.totalorder %v396, %v376
    %vm444 = vcmp.eq.s32.totalorder %v396, %v377
    %vm445 = vcmp.eq.s32.totalorder %v397, %v375
    %vm446 = vcmp.eq.s32.totalorder %v397, %v376
    %vm447 = vcmp.eq.s32.totalorder %v397, %v377
    %vm448 = vcmp.eq.s32.totalorder %v398, %v375
    %vm449 = vcmp.eq.s32.totalorder %v398, %v376
    %vm450 = vcmp.eq.s32.totalorder %v398, %v377
    %vm451 = vcmp.eq.s32.totalorder %v399, %v375
    %vm452 = vcmp.eq.s32.totalorder %v399, %v376
    %vm453 = vcmp.eq.s32.totalorder %v399, %v377
    %v454 = vsel %vm378, 1, 0
    %v455 = vsel %vm379, 1, 0
    %v456 = vsel %vm380, 1, 0
    %vm457 = vcmp.eq.s32.totalorder %v454, 1
    %vm458 = vcmp.eq.s32.totalorder %v455, 1
    %vm459 = vcmp.eq.s32.totalorder %v456, 1
    %vm460 = vmand %vm400, %vm457
    %vm461 = vmand %vm401, %vm458
    %vm462 = vmand %vm402, %vm459
    %vm463 = vmand %vm403, %vm457
    %vm464 = vmand %vm404, %vm458
    %vm465 = vmand %vm405, %vm459
    %vm466 = vmand %vm406, %vm457
    %vm467 = vmand %vm407, %vm458
    %vm468 = vmand %vm408, %vm459
    %vm469 = vmand %vm409, %vm457
    %vm470 = vmand %vm410, %vm458
    %vm471 = vmand %vm411, %vm459
    %vm472 = vmand %vm412, %vm457
    %vm473 = vmand %vm413, %vm458
    %vm474 = vmand %vm414, %vm459
    %vm475 = vmand %vm415, %vm457
    %vm476 = vmand %vm416, %vm458
    %vm477 = vmand %vm417, %vm459
    %vm478 = vmand %vm418, %vm457
    %vm479 = vmand %vm419, %vm458
    %vm480 = vmand %vm420, %vm459
    %vm481 = vmand %vm421, %vm457
    %vm482 = vmand %vm422, %vm458
    %vm483 = vmand %vm423, %vm459
    %vm484 = vmand %vm424, %vm457
    %vm485 = vmand %vm425, %vm458
    %vm486 = vmand %vm426, %vm459
    %vm487 = vmand %vm427, %vm457
    %vm488 = vmand %vm428, %vm458
    %vm489 = vmand %vm429, %vm459
    %vm490 = vmand %vm430, %vm457
    %vm491 = vmand %vm431, %vm458
    %vm492 = vmand %vm432, %vm459
    %vm493 = vmand %vm433, %vm457
    %vm494 = vmand %vm434, %vm458
    %vm495 = vmand %vm435, %vm459
    %vm496 = vmand %vm436, %vm457
    %vm497 = vmand %vm437, %vm458
    %vm498 = vmand %vm438, %vm459
    %vm499 = vmand %vm439, %vm457
    %vm500 = vmand %vm440, %vm458
    %vm501 = vmand %vm441, %vm459
    %vm502 = vmand %vm442, %vm457
    %vm503 = vmand %vm443, %vm458
    %vm504 = vmand %vm444, %vm459
    %vm505 = vmand %vm445, %vm457
    %vm506 = vmand %vm446, %vm458
    %vm507 = vmand %vm447, %vm459
    %vm508 = vmand %vm448, %vm457
    %vm509 = vmand %vm449, %vm458
    %vm510 = vmand %vm450, %vm459
    %vm511 = vmand %vm451, %vm457
    %vm512 = vmand %vm452, %vm458
    %vm513 = vmand %vm453, %vm459
    %v514 = vsel %vm460, 1.0, 0.0
    %v515 = vsel %vm461, 1.0, 0.0
    %v516 = vsel %vm462, 1.0, 0.0
    %v517 = vsel %vm463, 1.0, 0.0
    %v518 = vsel %vm464, 1.0, 0.0
    %v519 = vsel %vm465, 1.0, 0.0
    %v520 = vsel %vm466, 1.0, 0.0
    %v521 = vsel %vm467, 1.0, 0.0
    %v522 = vsel %vm468, 1.0, 0.0
    %v523 = vsel %vm469, 1.0, 0.0
    %v524 = vsel %vm470, 1.0, 0.0
    %v525 = vsel %vm471, 1.0, 0.0
    %v526 = vsel %vm472, 1.0, 0.0
    %v527 = vsel %vm473, 1.0, 0.0
    %v528 = vsel %vm474, 1.0, 0.0
    %v529 = vsel %vm475, 1.0, 0.0
    %v530 = vsel %vm476, 1.0, 0.0
    %v531 = vsel %vm477, 1.0, 0.0
    %v532 = vsel %vm478, 1.0, 0.0
    %v533 = vsel %vm479, 1.0, 0.0
    %v534 = vsel %vm480, 1.0, 0.0
    %v535 = vsel %vm481, 1.0, 0.0
    %v536 = vsel %vm482, 1.0, 0.0
    %v537 = vsel %vm483, 1.0, 0.0
    %v538 = vsel %vm484, 1.0, 0.0
    %v539 = vsel %vm485, 1.0, 0.0
    %v540 = vsel %vm486, 1.0, 0.0
    %v541 = vsel %vm487, 1.0, 0.0
    %v542 = vsel %vm488, 1.0, 0.0
    %v543 = vsel %vm489, 1.0, 0.0
    %v544 = vsel %vm490, 1.0, 0.0
    %v545 = vsel %vm491, 1.0, 0.0
    %v546 = vsel %vm492, 1.0, 0.0
    %v547 = vsel %vm493, 1.0, 0.0
    %v548 = vsel %vm494, 1.0, 0.0
    %v549 = vsel %vm495, 1.0, 0.0
    %v550 = vsel %vm496, 1.0, 0.0
    %v551 = vsel %vm497, 1.0, 0.0
    %v552 = vsel %vm498, 1.0, 0.0
    %v553 = vsel %vm499, 1.0, 0.0
    %v554 = vsel %vm500, 1.0, 0.0
    %v555 = vsel %vm501, 1.0, 0.0
    %v556 = vsel %vm502, 1.0, 0.0
    %v557 = vsel %vm503, 1.0, 0.0
    %v558 = vsel %vm504, 1.0, 0.0
    %v559 = vsel %vm505, 1.0, 0.0
    %v560 = vsel %vm506, 1.0, 0.0
    %v561 = vsel %vm507, 1.0, 0.0
    %v562 = vsel %vm508, 1.0, 0.0
    %v563 = vsel %vm509, 1.0, 0.0
    %v564 = vsel %vm510, 1.0, 0.0
    %v565 = vsel %vm511, 1.0, 0.0
    %v566 = vsel %vm512, 1.0, 0.0
    %v567 = vsel %vm513, 1.0, 0.0
    %v569 = vsel %vm138, %v200, 0
    %v572 = vsel %vm138, %v202, 0
    %574 = vmatprep.subr.mxu0 %v560
    %575 = vmatpush1.msra.mxu0 %v559
    %576 = vmatprep.subr.mxu0 %v557
    %577 = vmatpush1.msra.mxu0 %v556
    %578 = vmatprep.subr.mxu0 %v554
    %579 = vmatpush1.msra.mxu0 %v553
    %580 = vmatprep.subr.mxu0 %v551
    %581 = vmatpush1.msra.mxu0 %v550
    %582 = vmatprep.subr.mxu0 %v548
    %583 = vmatpush1.msra.mxu0 %v547
    %584 = vmatprep.subr.mxu0 %v545
    %585 = vmatpush1.msra.mxu0 %v544
    %586 = vmatprep.subr.mxu0 %v542
    %587 = vmatpush1.msra.mxu0 %v541
    %588 = vmatprep.subr.mxu0 %v539
    %589 = vmatpush1.msra.mxu0 %v538
    %590 = vmatprep.subr.mxu0 %v536
    %591 = vmatpush1.msra.mxu0 %v535
    %592 = vmatprep.subr.mxu0 %v533
    %593 = vmatpush1.msra.mxu0 %v532
    %594 = vmatprep.subr.mxu0 %v530
    %595 = vmatpush1.msra.mxu0 %v529
    %596 = vmatprep.subr.mxu0 %v527
    %597 = vmatpush1.msra.mxu0 %v526
    %598 = vmatprep.subr.mxu0 %v524
    %599 = vmatpush1.msra.mxu0 %v523
    %600 = vmatprep.subr.mxu0 %v521
    %601 = vmatpush1.msra.mxu0 %v520
    %602 = vmatprep.subr.mxu0 %v518
    %603 = vmatpush1.msra.mxu0 %v517
    %604 = vmatprep.subr.mxu0 %v515
    %605 = vmatpush1.msra.mxu0 %v514
    %606 = vmatprep.subr.mxu0 0.0
    %607 = vmatpush2.msra.mxu0 0.0
    %608 = vmatprep.subr.mxu0 0.0
    %609 = vmatpush2.msra.mxu0 0.0
    %610 = vmatprep.subr.mxu0 0.0
    %611 = vmatpush2.msra.mxu0 0.0
    %612 = vmatprep.subr.mxu0 0.0
    %613 = vmatpush2.msra.mxu0 0.0
    %614 = vmatprep.subr.mxu0 0.0
    %615 = vmatpush2.msra.mxu0 0.0
    %616 = vmatprep.subr.mxu0 0.0
    %617 = vmatpush2.msra.mxu0 0.0
    %618 = vmatprep.subr.mxu0 0.0
    %619 = vmatpush2.msra.mxu0 0.0
    %620 = vmatprep.subr.mxu0 0.0
    %621 = vmatpush2.msra.mxu0 0.0
    %622 = vmatprep.subr.mxu0 0.0
    %623 = vmatpush2.msra.mxu0 0.0
    %624 = vmatprep.subr.mxu0 0.0
    %625 = vmatpush2.msra.mxu0 0.0
    %626 = vmatprep.subr.mxu0 0.0
    %627 = vmatpush2.msra.mxu0 0.0
    %628 = vmatprep.subr.mxu0 0.0
    %629 = vmatpush2.msra.mxu0 0.0
    %630 = vmatprep.subr.mxu0 0.0
    %631 = vmatpush2.msra.mxu0 0.0
    %632 = vmatprep.subr.mxu0 0.0
    %633 = vmatpush2.msra.mxu0 0.0
    %634 = vmatprep.subr.mxu0 %v566
    %635 = vmatpush2.msra.mxu0 %v565
    %636 = vmatprep.subr.mxu0 %v563
    %637 = vmatpush2.msra.mxu0 %v562
    %638 = vmatprep.mubr.f32.mxu0 %v569
    %639 = vmatmul.mubr.f32.gmra.mxu0 %v199
    %v640 = vpop.f32.mrf.mxu0
    %v641 = vadd.f32 0.0, %v640
    %v642 = vpop.f32.mrf.mxu0
    %v643 = vadd.f32 0.0, %v642
    %644 = vmatprep.mubr.f32.mxu0 %v572
    %645 = vmatmul.mubr.f32.gmra.mxu0 %v201
    %v646 = vpop.f32.mrf.mxu0
    %v647 = vadd.f32 0.0, %v646
    %v648 = vpop.f32.mrf.mxu0
    %v649 = vadd.f32 0.0, %v648
    %650 = vdwg.mxu0
    %651 = vmatprep.subr.mxu0 0.0
    %652 = vmatpush1.msra.mxu0 %v561
    %653 = vmatprep.subr.mxu0 0.0
    %654 = vmatpush1.msra.mxu0 %v558
    %655 = vmatprep.subr.mxu0 0.0
    %656 = vmatpush1.msra.mxu0 %v555
    %657 = vmatprep.subr.mxu0 0.0
    %658 = vmatpush1.msra.mxu0 %v552
    %659 = vmatprep.subr.mxu0 0.0
    %660 = vmatpush1.msra.mxu0 %v549
    %661 = vmatprep.subr.mxu0 0.0
    %662 = vmatpush1.msra.mxu0 %v546
    %663 = vmatprep.subr.mxu0 0.0
    %664 = vmatpush1.msra.mxu0 %v543
    %665 = vmatprep.subr.mxu0 0.0
    %666 = vmatpush1.msra.mxu0 %v540
    %667 = vmatprep.subr.mxu0 0.0
    %668 = vmatpush1.msra.mxu0 %v537
    %669 = vmatprep.subr.mxu0 0.0
    %670 = vmatpush1.msra.mxu0 %v534
    %671 = vmatprep.subr.mxu0 0.0
    %672 = vmatpush1.msra.mxu0 %v531
    %673 = vmatprep.subr.mxu0 0.0
    %674 = vmatpush1.msra.mxu0 %v528
    %675 = vmatprep.subr.mxu0 0.0
    %676 = vmatpush1.msra.mxu0 %v525
    %677 = vmatprep.subr.mxu0 0.0
    %678 = vmatpush1.msra.mxu0 %v522
    %679 = vmatprep.subr.mxu0 0.0
    %680 = vmatpush1.msra.mxu0 %v519
    %681 = vmatprep.subr.mxu0 0.0
    %682 = vmatpush1.msra.mxu0 %v516
    %683 = vmatprep.subr.mxu0 0.0
    %684 = vmatpush2.msra.mxu0 0.0
    %685 = vmatprep.subr.mxu0 0.0
    %686 = vmatpush2.msra.mxu0 0.0
    %687 = vmatprep.subr.mxu0 0.0
    %688 = vmatpush2.msra.mxu0 0.0
    %689 = vmatprep.subr.mxu0 0.0
    %690 = vmatpush2.msra.mxu0 0.0
    %691 = vmatprep.subr.mxu0 0.0
    %692 = vmatpush2.msra.mxu0 0.0
    %693 = vmatprep.subr.mxu0 0.0
    %694 = vmatpush2.msra.mxu0 0.0
    %695 = vmatprep.subr.mxu0 0.0
    %696 = vmatpush2.msra.mxu0 0.0
    %697 = vmatprep.subr.mxu0 0.0
    %698 = vmatpush2.msra.mxu0 0.0
    %699 = vmatprep.subr.mxu0 0.0
    %700 = vmatpush2.msra.mxu0 0.0
    %701 = vmatprep.subr.mxu0 0.0
    %702 = vmatpush2.msra.mxu0 0.0
    %703 = vmatprep.subr.mxu0 0.0
    %704 = vmatpush2.msra.mxu0 0.0
    %705 = vmatprep.subr.mxu0 0.0
    %706 = vmatpush2.msra.mxu0 0.0
    %707 = vmatprep.subr.mxu0 0.0
    %708 = vmatpush2.msra.mxu0 0.0
    %709 = vmatprep.subr.mxu0 0.0
    %710 = vmatpush2.msra.mxu0 0.0
    %711 = vmatprep.subr.mxu0 0.0
    %712 = vmatpush2.msra.mxu0 %v567
    %713 = vmatprep.subr.mxu0 0.0
    %714 = vmatpush2.msra.mxu0 %v564
    %715 = vmatprep.mubr.f32.mxu0 %v569
    %716 = vmatmul.mubr.f32.gmra.mxu0 %v199
    %v717 = vpop.f32.mrf.mxu0
    %v718 = vadd.f32 0.0, %v717
    %v719 = vpop.f32.mrf.mxu0
    %720 = vmatprep.mubr.f32.mxu0 %v572
    %721 = vmatmul.mubr.f32.gmra.mxu0 %v201
    %v722 = vpop.f32.mrf.mxu0
    %v723 = vadd.f32 0.0, %v722
    %v724 = vpop.f32.mrf.mxu0
    %725 = vdwg.mxu0
    %728 = vrot.lane.b32.xlu0 %v17, 92
    %v729 = vpop.permute.xlu0 %728
    %730 = vrot.lane.b32.xlu0 %v18, 92
    %v731 = vpop.permute.xlu0 %730
    %734 = vrot.lane.b32.xlu0 %v641, 32
    %v735 = vpop.permute.xlu0 %734
    %736 = vrot.lane.b32.xlu0 %v647, 32
    %v737 = vpop.permute.xlu0 %736
    %vm739 = vcmask 80896
    %v740 = vsel %vm739, %v729, 0
    %v742 = vsel %vm739, %v731, 0
    %v744 = vsel %vm143, %v737, 0
    %746 = vmatprep.subr.mxu0 0.0
    %747 = vmatpush1.msra.mxu0 0.0
    %748 = vmatprep.subr.mxu0 0.0
    %749 = vmatpush1.msra.mxu0 0.0
    %750 = vmatprep.subr.mxu0 0.0
    %751 = vmatpush1.msra.mxu0 0.0
    %752 = vmatprep.subr.mxu0 0.0
    %753 = vmatpush1.msra.mxu0 0.0
    %754 = vmatprep.subr.mxu0 0.0
    %755 = vmatpush1.msra.mxu0 0.0
    %756 = vmatprep.subr.mxu0 0.0
    %757 = vmatpush1.msra.mxu0 0.0
    %758 = vmatprep.subr.mxu0 0.0
    %759 = vmatpush1.msra.mxu0 0.0
    %760 = vmatprep.subr.mxu0 0.0
    %761 = vmatpush1.msra.mxu0 0.0
    %762 = vmatprep.subr.mxu0 0.0
    %763 = vmatpush1.msra.mxu0 0.0
    %764 = vmatprep.subr.mxu0 0.0
    %765 = vmatpush1.msra.mxu0 0.0
    %766 = vmatprep.subr.mxu0 0.0
    %767 = vmatpush1.msra.mxu0 0.0
    %768 = vmatprep.subr.mxu0 0.0
    %769 = vmatpush1.msra.mxu0 0.0
    %770 = vmatprep.subr.mxu0 0.0
    %771 = vmatpush1.msra.mxu0 0.0
    %772 = vmatprep.subr.mxu0 0.0
    %773 = vmatpush1.msra.mxu0 0.0
    %774 = vmatprep.subr.mxu0 0.0
    %775 = vmatpush1.msra.mxu0 %v744
    %776 = vmatprep.subr.mxu0 0.0
    %777 = vmatpush1.msra.mxu0 %v735
    %778 = vmatprep.subr.mxu0 0.0
    %779 = vmatpush2.msra.mxu0 0.0
    %780 = vmatprep.subr.mxu0 0.0
    %781 = vmatpush2.msra.mxu0 0.0
    %782 = vmatprep.subr.mxu0 0.0
    %783 = vmatpush2.msra.mxu0 0.0
    %784 = vmatprep.subr.mxu0 0.0
    %785 = vmatpush2.msra.mxu0 0.0
    %786 = vmatprep.subr.mxu0 0.0
    %787 = vmatpush2.msra.mxu0 0.0
    %788 = vmatprep.subr.mxu0 0.0
    %789 = vmatpush2.msra.mxu0 0.0
    %790 = vmatprep.subr.mxu0 0.0
    %791 = vmatpush2.msra.mxu0 0.0
    %792 = vmatprep.subr.mxu0 0.0
    %793 = vmatpush2.msra.mxu0 0.0
    %794 = vmatprep.subr.mxu0 0.0
    %795 = vmatpush2.msra.mxu0 0.0
    %796 = vmatprep.subr.mxu0 0.0
    %797 = vmatpush2.msra.mxu0 0.0
    %798 = vmatprep.subr.mxu0 0.0
    %799 = vmatpush2.msra.mxu0 0.0
    %800 = vmatprep.subr.mxu0 0.0
    %801 = vmatpush2.msra.mxu0 0.0
    %802 = vmatprep.subr.mxu0 0.0
    %803 = vmatpush2.msra.mxu0 0.0
    %804 = vmatprep.subr.mxu0 0.0
    %805 = vmatpush2.msra.mxu0 0.0
    %806 = vmatprep.subr.mxu0 0.0
    %807 = vmatpush2.msra.mxu0 0.0
    %808 = vmatprep.subr.mxu0 0.0
    %809 = vmatpush2.msra.mxu0 0.0
    %810 = vmatprep.mubr.f32.mxu0 0.0
    %811 = vmatmul.mubr.f32.gmra.mxu0 %v740
    %v812 = vpop.f32.mrf.mxu0
    %v813 = vadd.f32 0.0, %v812
    %v814 = vpop.f32.mrf.mxu0
    %815 = vmatprep.mubr.f32.mxu0 0.0
    %816 = vmatmul.mubr.f32.gmra.mxu0 %v742
    %v817 = vpop.f32.mrf.mxu0
    %v818 = vadd.f32 0.0, %v817
    %v819 = vpop.f32.mrf.mxu0
    %820 = vdwg.mxu0
    %v821 = vsel %vm739, %v17, 0
    %v823 = vsel %vm739, %v18, 0
    %v825 = vsel %vm143, %v647, 0
    %827 = vmatprep.subr.mxu0 0.0
    %828 = vmatpush1.msra.mxu0 0.0
    %829 = vmatprep.subr.mxu0 0.0
    %830 = vmatpush1.msra.mxu0 0.0
    %831 = vmatprep.subr.mxu0 0.0
    %832 = vmatpush1.msra.mxu0 0.0
    %833 = vmatprep.subr.mxu0 0.0
    %834 = vmatpush1.msra.mxu0 0.0
    %835 = vmatprep.subr.mxu0 0.0
    %836 = vmatpush1.msra.mxu0 0.0
    %837 = vmatprep.subr.mxu0 0.0
    %838 = vmatpush1.msra.mxu0 0.0
    %839 = vmatprep.subr.mxu0 0.0
    %840 = vmatpush1.msra.mxu0 0.0
    %841 = vmatprep.subr.mxu0 0.0
    %842 = vmatpush1.msra.mxu0 0.0
    %843 = vmatprep.subr.mxu0 0.0
    %844 = vmatpush1.msra.mxu0 0.0
    %845 = vmatprep.subr.mxu0 0.0
    %846 = vmatpush1.msra.mxu0 0.0
    %847 = vmatprep.subr.mxu0 0.0
    %848 = vmatpush1.msra.mxu0 0.0
    %849 = vmatprep.subr.mxu0 0.0
    %850 = vmatpush1.msra.mxu0 0.0
    %851 = vmatprep.subr.mxu0 0.0
    %852 = vmatpush1.msra.mxu0 0.0
    %853 = vmatprep.subr.mxu0 0.0
    %854 = vmatpush1.msra.mxu0 0.0
    %855 = vmatprep.subr.mxu0 0.0
    %856 = vmatpush1.msra.mxu0 %v825
    %857 = vmatprep.subr.mxu0 0.0
    %858 = vmatpush1.msra.mxu0 %v641
    %859 = vmatprep.subr.mxu0 0.0
    %860 = vmatpush2.msra.mxu0 0.0
    %861 = vmatprep.subr.mxu0 0.0
    %862 = vmatpush2.msra.mxu0 0.0
    %863 = vmatprep.subr.mxu0 0.0
    %864 = vmatpush2.msra.mxu0 0.0
    %865 = vmatprep.subr.mxu0 0.0
    %866 = vmatpush2.msra.mxu0 0.0
    %867 = vmatprep.subr.mxu0 0.0
    %868 = vmatpush2.msra.mxu0 0.0
    %869 = vmatprep.subr.mxu0 0.0
    %870 = vmatpush2.msra.mxu0 0.0
    %871 = vmatprep.subr.mxu0 0.0
    %872 = vmatpush2.msra.mxu0 0.0
    %873 = vmatprep.subr.mxu0 0.0
    %874 = vmatpush2.msra.mxu0 0.0
    %875 = vmatprep.subr.mxu0 0.0
    %876 = vmatpush2.msra.mxu0 0.0
    %877 = vmatprep.subr.mxu0 0.0
    %878 = vmatpush2.msra.mxu0 0.0
    %879 = vmatprep.subr.mxu0 0.0
    %880 = vmatpush2.msra.mxu0 0.0
    %881 = vmatprep.subr.mxu0 0.0
    %882 = vmatpush2.msra.mxu0 0.0
    %883 = vmatprep.subr.mxu0 0.0
    %884 = vmatpush2.msra.mxu0 0.0
    %885 = vmatprep.subr.mxu0 0.0
    %886 = vmatpush2.msra.mxu0 0.0
    %887 = vmatprep.subr.mxu0 0.0
    %888 = vmatpush2.msra.mxu0 0.0
    %889 = vmatprep.subr.mxu0 0.0
    %890 = vmatpush2.msra.mxu0 0.0
    %891 = vmatprep.mubr.f32.mxu0 0.0
    %892 = vmatmul.mubr.f32.gmra.mxu0 %v821
    %v893 = vpop.f32.mrf.mxu0
    %v894 = vadd.f32 %v813, %v893
    %v895 = vpop.f32.mrf.mxu0
    %896 = vmatprep.mubr.f32.mxu0 0.0
    %897 = vmatmul.mubr.f32.gmra.mxu0 %v823
    %v898 = vpop.f32.mrf.mxu0
    %v899 = vadd.f32 %v818, %v898
    %v900 = vpop.f32.mrf.mxu0
    %901 = vdwg.mxu0
    %902 = vrot.lane.b32.xlu0 %v17, 80
    %v903 = vpop.permute.xlu0 %902
    %904 = vrot.lane.b32.xlu0 %v18, 80
    %v905 = vpop.permute.xlu0 %904
    %v906 = vsel %vm739, %v903, 0
    %v908 = vsel %vm739, %v905, 0
    %v911 = vsel %vm143, %v649, 0
    %913 = vmatprep.subr.mxu0 0.0
    %914 = vmatpush1.msra.mxu0 0.0
    %915 = vmatprep.subr.mxu0 0.0
    %916 = vmatpush1.msra.mxu0 0.0
    %917 = vmatprep.subr.mxu0 0.0
    %918 = vmatpush1.msra.mxu0 0.0
    %919 = vmatprep.subr.mxu0 0.0
    %920 = vmatpush1.msra.mxu0 0.0
    %921 = vmatprep.subr.mxu0 0.0
    %922 = vmatpush1.msra.mxu0 0.0
    %923 = vmatprep.subr.mxu0 0.0
    %924 = vmatpush1.msra.mxu0 0.0
    %925 = vmatprep.subr.mxu0 0.0
    %926 = vmatpush1.msra.mxu0 0.0
    %927 = vmatprep.subr.mxu0 0.0
    %928 = vmatpush1.msra.mxu0 0.0
    %929 = vmatprep.subr.mxu0 0.0
    %930 = vmatpush1.msra.mxu0 0.0
    %931 = vmatprep.subr.mxu0 0.0
    %932 = vmatpush1.msra.mxu0 0.0
    %933 = vmatprep.subr.mxu0 0.0
    %934 = vmatpush1.msra.mxu0 0.0
    %935 = vmatprep.subr.mxu0 0.0
    %936 = vmatpush1.msra.mxu0 0.0
    %937 = vmatprep.subr.mxu0 0.0
    %938 = vmatpush1.msra.mxu0 0.0
    %939 = vmatprep.subr.mxu0 0.0
    %940 = vmatpush1.msra.mxu0 0.0
    %941 = vmatprep.subr.mxu0 0.0
    %942 = vmatpush1.msra.mxu0 %v911
    %943 = vmatprep.subr.mxu0 0.0
    %944 = vmatpush1.msra.mxu0 %v643
    %945 = vmatprep.subr.mxu0 0.0
    %946 = vmatpush2.msra.mxu0 0.0
    %947 = vmatprep.subr.mxu0 0.0
    %948 = vmatpush2.msra.mxu0 0.0
    %949 = vmatprep.subr.mxu0 0.0
    %950 = vmatpush2.msra.mxu0 0.0
    %951 = vmatprep.subr.mxu0 0.0
    %952 = vmatpush2.msra.mxu0 0.0
    %953 = vmatprep.subr.mxu0 0.0
    %954 = vmatpush2.msra.mxu0 0.0
    %955 = vmatprep.subr.mxu0 0.0
    %956 = vmatpush2.msra.mxu0 0.0
    %957 = vmatprep.subr.mxu0 0.0
    %958 = vmatpush2.msra.mxu0 0.0
    %959 = vmatprep.subr.mxu0 0.0
    %960 = vmatpush2.msra.mxu0 0.0
    %961 = vmatprep.subr.mxu0 0.0
    %962 = vmatpush2.msra.mxu0 0.0
    %963 = vmatprep.subr.mxu0 0.0
    %964 = vmatpush2.msra.mxu0 0.0
    %965 = vmatprep.subr.mxu0 0.0
    %966 = vmatpush2.msra.mxu0 0.0
    %967 = vmatprep.subr.mxu0 0.0
    %968 = vmatpush2.msra.mxu0 0.0
    %969 = vmatprep.subr.mxu0 0.0
    %970 = vmatpush2.msra.mxu0 0.0
    %971 = vmatprep.subr.mxu0 0.0
    %972 = vmatpush2.msra.mxu0 0.0
    %973 = vmatprep.subr.mxu0 0.0
    %974 = vmatpush2.msra.mxu0 0.0
    %975 = vmatprep.subr.mxu0 0.0
    %976 = vmatpush2.msra.mxu0 0.0
    %977 = vmatprep.mubr.f32.mxu0 0.0
    %978 = vmatmul.mubr.f32.gmra.mxu0 %v906
    %v979 = vpop.f32.mrf.mxu0
    %v980 = vadd.f32 0.0, %v979
    %v981 = vpop.f32.mrf.mxu0
    %982 = vmatprep.mubr.f32.mxu0 0.0
    %983 = vmatmul.mubr.f32.gmra.mxu0 %v908
    %v984 = vpop.f32.mrf.mxu0
    %v985 = vadd.f32 0.0, %v984
    %v986 = vpop.f32.mrf.mxu0
    %987 = vdwg.mxu0
    %988 = vrot.lane.b32.xlu0 %v17, 116
    %v989 = vpop.permute.xlu0 %988
    %990 = vrot.lane.b32.xlu0 %v18, 116
    %v991 = vpop.permute.xlu0 %990
    %992 = vrot.lane.b32.xlu0 %v641, 96
    %v993 = vpop.permute.xlu0 %992
    %994 = vrot.lane.b32.xlu0 %v647, 96
    %v995 = vpop.permute.xlu0 %994
    %v997 = vsel %vm739, %v989, 0
    %v999 = vsel %vm739, %v991, 0
    %v1001 = vsel %vm143, %v995, 0
    %1003 = vmatprep.subr.mxu0 0.0
    %1004 = vmatpush1.msra.mxu0 0.0
    %1005 = vmatprep.subr.mxu0 0.0
    %1006 = vmatpush1.msra.mxu0 0.0
    %1007 = vmatprep.subr.mxu0 0.0
    %1008 = vmatpush1.msra.mxu0 0.0
    %1009 = vmatprep.subr.mxu0 0.0
    %1010 = vmatpush1.msra.mxu0 0.0
    %1011 = vmatprep.subr.mxu0 0.0
    %1012 = vmatpush1.msra.mxu0 0.0
    %1013 = vmatprep.subr.mxu0 0.0
    %1014 = vmatpush1.msra.mxu0 0.0
    %1015 = vmatprep.subr.mxu0 0.0
    %1016 = vmatpush1.msra.mxu0 0.0
    %1017 = vmatprep.subr.mxu0 0.0
    %1018 = vmatpush1.msra.mxu0 0.0
    %1019 = vmatprep.subr.mxu0 0.0
    %1020 = vmatpush1.msra.mxu0 0.0
    %1021 = vmatprep.subr.mxu0 0.0
    %1022 = vmatpush1.msra.mxu0 0.0
    %1023 = vmatprep.subr.mxu0 0.0
    %1024 = vmatpush1.msra.mxu0 0.0
    %1025 = vmatprep.subr.mxu0 0.0
    %1026 = vmatpush1.msra.mxu0 0.0
    %1027 = vmatprep.subr.mxu0 0.0
    %1028 = vmatpush1.msra.mxu0 0.0
    %1029 = vmatprep.subr.mxu0 0.0
    %1030 = vmatpush1.msra.mxu0 0.0
    %1031 = vmatprep.subr.mxu0 0.0
    %1032 = vmatpush1.msra.mxu0 %v1001
    %1033 = vmatprep.subr.mxu0 0.0
    %1034 = vmatpush1.msra.mxu0 %v993
    %1035 = vmatprep.subr.mxu0 0.0
    %1036 = vmatpush2.msra.mxu0 0.0
    %1037 = vmatprep.subr.mxu0 0.0
    %1038 = vmatpush2.msra.mxu0 0.0
    %1039 = vmatprep.subr.mxu0 0.0
    %1040 = vmatpush2.msra.mxu0 0.0
    %1041 = vmatprep.subr.mxu0 0.0
    %1042 = vmatpush2.msra.mxu0 0.0
    %1043 = vmatprep.subr.mxu0 0.0
    %1044 = vmatpush2.msra.mxu0 0.0
    %1045 = vmatprep.subr.mxu0 0.0
    %1046 = vmatpush2.msra.mxu0 0.0
    %1047 = vmatprep.subr.mxu0 0.0
    %1048 = vmatpush2.msra.mxu0 0.0
    %1049 = vmatprep.subr.mxu0 0.0
    %1050 = vmatpush2.msra.mxu0 0.0
    %1051 = vmatprep.subr.mxu0 0.0
    %1052 = vmatpush2.msra.mxu0 0.0
    %1053 = vmatprep.subr.mxu0 0.0
    %1054 = vmatpush2.msra.mxu0 0.0
    %1055 = vmatprep.subr.mxu0 0.0
    %1056 = vmatpush2.msra.mxu0 0.0
    %1057 = vmatprep.subr.mxu0 0.0
    %1058 = vmatpush2.msra.mxu0 0.0
    %1059 = vmatprep.subr.mxu0 0.0
    %1060 = vmatpush2.msra.mxu0 0.0
    %1061 = vmatprep.subr.mxu0 0.0
    %1062 = vmatpush2.msra.mxu0 0.0
    %1063 = vmatprep.subr.mxu0 0.0
    %1064 = vmatpush2.msra.mxu0 0.0
    %1065 = vmatprep.subr.mxu0 0.0
    %1066 = vmatpush2.msra.mxu0 0.0
    %1067 = vmatprep.mubr.f32.mxu0 0.0
    %1068 = vmatmul.mubr.f32.gmra.mxu0 %v997
    %v1069 = vpop.f32.mrf.mxu0
    %v1070 = vadd.f32 %v980, %v1069
    %v1071 = vpop.f32.mrf.mxu0
    %1072 = vmatprep.mubr.f32.mxu0 0.0
    %1073 = vmatmul.mubr.f32.gmra.mxu0 %v999
    %v1074 = vpop.f32.mrf.mxu0
    %v1075 = vadd.f32 %v985, %v1074
    %v1076 = vpop.f32.mrf.mxu0
    %1077 = vdwg.mxu0
    %1078 = vrot.lane.b32.xlu0 %v17, 68
    %v1079 = vpop.permute.xlu0 %1078
    %1080 = vrot.lane.b32.xlu0 %v18, 68
    %v1081 = vpop.permute.xlu0 %1080
    %1083 = vrot.lane.b32.xlu0 %v643, 96
    %v1084 = vpop.permute.xlu0 %1083
    %1085 = vrot.lane.b32.xlu0 %v649, 96
    %v1086 = vpop.permute.xlu0 %1085
    %v1088 = vsel %vm739, %v1079, 0
    %v1090 = vsel %vm739, %v1081, 0
    %v1092 = vsel %vm143, %v1086, 0
    %1094 = vmatprep.subr.mxu0 0.0
    %1095 = vmatpush1.msra.mxu0 0.0
    %1096 = vmatprep.subr.mxu0 0.0
    %1097 = vmatpush1.msra.mxu0 0.0
    %1098 = vmatprep.subr.mxu0 0.0
    %1099 = vmatpush1.msra.mxu0 0.0
    %1100 = vmatprep.subr.mxu0 0.0
    %1101 = vmatpush1.msra.mxu0 0.0
    %1102 = vmatprep.subr.mxu0 0.0
    %1103 = vmatpush1.msra.mxu0 0.0
    %1104 = vmatprep.subr.mxu0 0.0
    %1105 = vmatpush1.msra.mxu0 0.0
    %1106 = vmatprep.subr.mxu0 0.0
    %1107 = vmatpush1.msra.mxu0 0.0
    %1108 = vmatprep.subr.mxu0 0.0
    %1109 = vmatpush1.msra.mxu0 0.0
    %1110 = vmatprep.subr.mxu0 0.0
    %1111 = vmatpush1.msra.mxu0 0.0
    %1112 = vmatprep.subr.mxu0 0.0
    %1113 = vmatpush1.msra.mxu0 0.0
    %1114 = vmatprep.subr.mxu0 0.0
    %1115 = vmatpush1.msra.mxu0 0.0
    %1116 = vmatprep.subr.mxu0 0.0
    %1117 = vmatpush1.msra.mxu0 0.0
    %1118 = vmatprep.subr.mxu0 0.0
    %1119 = vmatpush1.msra.mxu0 0.0
    %1120 = vmatprep.subr.mxu0 0.0
    %1121 = vmatpush1.msra.mxu0 0.0
    %1122 = vmatprep.subr.mxu0 0.0
    %1123 = vmatpush1.msra.mxu0 %v1092
    %1124 = vmatprep.subr.mxu0 0.0
    %1125 = vmatpush1.msra.mxu0 %v1084
    %1126 = vmatprep.subr.mxu0 0.0
    %1127 = vmatpush2.msra.mxu0 0.0
    %1128 = vmatprep.subr.mxu0 0.0
    %1129 = vmatpush2.msra.mxu0 0.0
    %1130 = vmatprep.subr.mxu0 0.0
    %1131 = vmatpush2.msra.mxu0 0.0
    %1132 = vmatprep.subr.mxu0 0.0
    %1133 = vmatpush2.msra.mxu0 0.0
    %1134 = vmatprep.subr.mxu0 0.0
    %1135 = vmatpush2.msra.mxu0 0.0
    %1136 = vmatprep.subr.mxu0 0.0
    %1137 = vmatpush2.msra.mxu0 0.0
    %1138 = vmatprep.subr.mxu0 0.0
    %1139 = vmatpush2.msra.mxu0 0.0
    %1140 = vmatprep.subr.mxu0 0.0
    %1141 = vmatpush2.msra.mxu0 0.0
    %1142 = vmatprep.subr.mxu0 0.0
    %1143 = vmatpush2.msra.mxu0 0.0
    %1144 = vmatprep.subr.mxu0 0.0
    %1145 = vmatpush2.msra.mxu0 0.0
    %1146 = vmatprep.subr.mxu0 0.0
    %1147 = vmatpush2.msra.mxu0 0.0
    %1148 = vmatprep.subr.mxu0 0.0
    %1149 = vmatpush2.msra.mxu0 0.0
    %1150 = vmatprep.subr.mxu0 0.0
    %1151 = vmatpush2.msra.mxu0 0.0
    %1152 = vmatprep.subr.mxu0 0.0
    %1153 = vmatpush2.msra.mxu0 0.0
    %1154 = vmatprep.subr.mxu0 0.0
    %1155 = vmatpush2.msra.mxu0 0.0
    %1156 = vmatprep.subr.mxu0 0.0
    %1157 = vmatpush2.msra.mxu0 0.0
    %1158 = vmatprep.mubr.f32.mxu0 0.0
    %1159 = vmatmul.mubr.f32.gmra.mxu0 %v1088
    %v1160 = vpop.f32.mrf.mxu0
    %v1161 = vadd.f32 0.0, %v1160
    %v1162 = vpop.f32.mrf.mxu0
    %1163 = vmatprep.mubr.f32.mxu0 0.0
    %1164 = vmatmul.mubr.f32.gmra.mxu0 %v1090
    %v1165 = vpop.f32.mrf.mxu0
    %v1166 = vadd.f32 0.0, %v1165
    %v1167 = vpop.f32.mrf.mxu0
    %1168 = vdwg.mxu0
    %1169 = vrot.lane.b32.xlu0 %v17, 104
    %v1170 = vpop.permute.xlu0 %1169
    %1171 = vrot.lane.b32.xlu0 %v18, 104
    %v1172 = vpop.permute.xlu0 %1171
    %1173 = vrot.lane.b32.xlu0 %v641, 64
    %v1174 = vpop.permute.xlu0 %1173
    %1175 = vrot.lane.b32.xlu0 %v647, 64
    %v1176 = vpop.permute.xlu0 %1175
    %v1178 = vsel %vm739, %v1170, 0
    %v1180 = vsel %vm739, %v1172, 0
    %v1182 = vsel %vm143, %v1176, 0
    %1184 = vmatprep.subr.mxu0 0.0
    %1185 = vmatpush1.msra.mxu0 0.0
    %1186 = vmatprep.subr.mxu0 0.0
    %1187 = vmatpush1.msra.mxu0 0.0
    %1188 = vmatprep.subr.mxu0 0.0
    %1189 = vmatpush1.msra.mxu0 0.0
    %1190 = vmatprep.subr.mxu0 0.0
    %1191 = vmatpush1.msra.mxu0 0.0
    %1192 = vmatprep.subr.mxu0 0.0
    %1193 = vmatpush1.msra.mxu0 0.0
    %1194 = vmatprep.subr.mxu0 0.0
    %1195 = vmatpush1.msra.mxu0 0.0
    %1196 = vmatprep.subr.mxu0 0.0
    %1197 = vmatpush1.msra.mxu0 0.0
    %1198 = vmatprep.subr.mxu0 0.0
    %1199 = vmatpush1.msra.mxu0 0.0
    %1200 = vmatprep.subr.mxu0 0.0
    %1201 = vmatpush1.msra.mxu0 0.0
    %1202 = vmatprep.subr.mxu0 0.0
    %1203 = vmatpush1.msra.mxu0 0.0
    %1204 = vmatprep.subr.mxu0 0.0
    %1205 = vmatpush1.msra.mxu0 0.0
    %1206 = vmatprep.subr.mxu0 0.0
    %1207 = vmatpush1.msra.mxu0 0.0
    %1208 = vmatprep.subr.mxu0 0.0
    %1209 = vmatpush1.msra.mxu0 0.0
    %1210 = vmatprep.subr.mxu0 0.0
    %1211 = vmatpush1.msra.mxu0 0.0
    %1212 = vmatprep.subr.mxu0 0.0
    %1213 = vmatpush1.msra.mxu0 %v1182
    %1214 = vmatprep.subr.mxu0 0.0
    %1215 = vmatpush1.msra.mxu0 %v1174
    %1216 = vmatprep.subr.mxu0 0.0
    %1217 = vmatpush2.msra.mxu0 0.0
    %1218 = vmatprep.subr.mxu0 0.0
    %1219 = vmatpush2.msra.mxu0 0.0
    %1220 = vmatprep.subr.mxu0 0.0
    %1221 = vmatpush2.msra.mxu0 0.0
    %1222 = vmatprep.subr.mxu0 0.0
    %1223 = vmatpush2.msra.mxu0 0.0
    %1224 = vmatprep.subr.mxu0 0.0
    %1225 = vmatpush2.msra.mxu0 0.0
    %1226 = vmatprep.subr.mxu0 0.0
    %1227 = vmatpush2.msra.mxu0 0.0
    %1228 = vmatprep.subr.mxu0 0.0
    %1229 = vmatpush2.msra.mxu0 0.0
    %1230 = vmatprep.subr.mxu0 0.0
    %1231 = vmatpush2.msra.mxu0 0.0
    %1232 = vmatprep.subr.mxu0 0.0
    %1233 = vmatpush2.msra.mxu0 0.0
    %1234 = vmatprep.subr.mxu0 0.0
    %1235 = vmatpush2.msra.mxu0 0.0
    %1236 = vmatprep.subr.mxu0 0.0
    %1237 = vmatpush2.msra.mxu0 0.0
    %1238 = vmatprep.subr.mxu0 0.0
    %1239 = vmatpush2.msra.mxu0 0.0
    %1240 = vmatprep.subr.mxu0 0.0
    %1241 = vmatpush2.msra.mxu0 0.0
    %1242 = vmatprep.subr.mxu0 0.0
    %1243 = vmatpush2.msra.mxu0 0.0
    %1244 = vmatprep.subr.mxu0 0.0
    %1245 = vmatpush2.msra.mxu0 0.0
    %1246 = vmatprep.subr.mxu0 0.0
    %1247 = vmatpush2.msra.mxu0 0.0
    %1248 = vmatprep.mubr.f32.mxu0 0.0
    %1249 = vmatmul.mubr.f32.gmra.mxu0 %v1178
    %v1250 = vpop.f32.mrf.mxu0
    %v1251 = vadd.f32 %v1161, %v1250
    %v1252 = vpop.f32.mrf.mxu0
    %1253 = vmatprep.mubr.f32.mxu0 0.0
    %1254 = vmatmul.mubr.f32.gmra.mxu0 %v1180
    %v1255 = vpop.f32.mrf.mxu0
    %v1256 = vadd.f32 %v1166, %v1255
    %v1257 = vpop.f32.mrf.mxu0
    %1258 = vdwg.mxu0
    %1259 = vrot.lane.b32.xlu0 %v17, 56
    %v1260 = vpop.permute.xlu0 %1259
    %1261 = vrot.lane.b32.xlu0 %v18, 56
    %v1262 = vpop.permute.xlu0 %1261
    %1263 = vrot.lane.b32.xlu0 %v643, 64
    %v1264 = vpop.permute.xlu0 %1263
    %1265 = vrot.lane.b32.xlu0 %v649, 64
    %v1266 = vpop.permute.xlu0 %1265
    %v1268 = vsel %vm739, %v1260, 0
    %v1270 = vsel %vm739, %v1262, 0
    %v1272 = vsel %vm143, %v1266, 0
    %1274 = vmatprep.subr.mxu0 0.0
    %1275 = vmatpush1.msra.mxu0 0.0
    %1276 = vmatprep.subr.mxu0 0.0
    %1277 = vmatpush1.msra.mxu0 0.0
    %1278 = vmatprep.subr.mxu0 0.0
    %1279 = vmatpush1.msra.mxu0 0.0
    %1280 = vmatprep.subr.mxu0 0.0
    %1281 = vmatpush1.msra.mxu0 0.0
    %1282 = vmatprep.subr.mxu0 0.0
    %1283 = vmatpush1.msra.mxu0 0.0
    %1284 = vmatprep.subr.mxu0 0.0
    %1285 = vmatpush1.msra.mxu0 0.0
    %1286 = vmatprep.subr.mxu0 0.0
    %1287 = vmatpush1.msra.mxu0 0.0
    %1288 = vmatprep.subr.mxu0 0.0
    %1289 = vmatpush1.msra.mxu0 0.0
    %1290 = vmatprep.subr.mxu0 0.0
    %1291 = vmatpush1.msra.mxu0 0.0
    %1292 = vmatprep.subr.mxu0 0.0
    %1293 = vmatpush1.msra.mxu0 0.0
    %1294 = vmatprep.subr.mxu0 0.0
    %1295 = vmatpush1.msra.mxu0 0.0
    %1296 = vmatprep.subr.mxu0 0.0
    %1297 = vmatpush1.msra.mxu0 0.0
    %1298 = vmatprep.subr.mxu0 0.0
    %1299 = vmatpush1.msra.mxu0 0.0
    %1300 = vmatprep.subr.mxu0 0.0
    %1301 = vmatpush1.msra.mxu0 0.0
    %1302 = vmatprep.subr.mxu0 0.0
    %1303 = vmatpush1.msra.mxu0 %v1272
    %1304 = vmatprep.subr.mxu0 0.0
    %1305 = vmatpush1.msra.mxu0 %v1264
    %1306 = vmatprep.subr.mxu0 0.0
    %1307 = vmatpush2.msra.mxu0 0.0
    %1308 = vmatprep.subr.mxu0 0.0
    %1309 = vmatpush2.msra.mxu0 0.0
    %1310 = vmatprep.subr.mxu0 0.0
    %1311 = vmatpush2.msra.mxu0 0.0
    %1312 = vmatprep.subr.mxu0 0.0
    %1313 = vmatpush2.msra.mxu0 0.0
    %1314 = vmatprep.subr.mxu0 0.0
    %1315 = vmatpush2.msra.mxu0 0.0
    %1316 = vmatprep.subr.mxu0 0.0
    %1317 = vmatpush2.msra.mxu0 0.0
    %1318 = vmatprep.subr.mxu0 0.0
    %1319 = vmatpush2.msra.mxu0 0.0
    %1320 = vmatprep.subr.mxu0 0.0
    %1321 = vmatpush2.msra.mxu0 0.0
    %1322 = vmatprep.subr.mxu0 0.0
    %1323 = vmatpush2.msra.mxu0 0.0
    %1324 = vmatprep.subr.mxu0 0.0
    %1325 = vmatpush2.msra.mxu0 0.0
    %1326 = vmatprep.subr.mxu0 0.0
    %1327 = vmatpush2.msra.mxu0 0.0
    %1328 = vmatprep.subr.mxu0 0.0
    %1329 = vmatpush2.msra.mxu0 0.0
    %1330 = vmatprep.subr.mxu0 0.0
    %1331 = vmatpush2.msra.mxu0 0.0
    %1332 = vmatprep.subr.mxu0 0.0
    %1333 = vmatpush2.msra.mxu0 0.0
    %1334 = vmatprep.subr.mxu0 0.0
    %1335 = vmatpush2.msra.mxu0 0.0
    %1336 = vmatprep.subr.mxu0 0.0
    %1337 = vmatpush2.msra.mxu0 0.0
    %1338 = vmatprep.mubr.f32.mxu0 0.0
    %1339 = vmatmul.mubr.f32.gmra.mxu0 %v1268
    %v1340 = vpop.f32.mrf.mxu0
    %v1341 = vadd.f32 0.0, %v1340
    %v1342 = vpop.f32.mrf.mxu0
    %1343 = vmatprep.mubr.f32.mxu0 0.0
    %1344 = vmatmul.mubr.f32.gmra.mxu0 %v1270
    %v1345 = vpop.f32.mrf.mxu0
    %v1346 = vadd.f32 0.0, %v1345
    %v1347 = vpop.f32.mrf.mxu0
    %1348 = vdwg.mxu0
    %v1349 = vadd.f32 %v894, %v1341
    %v1350 = vadd.f32 %v899, %v1346
    %1351 = vrot.lane.b32.xlu0 %v17, 44
    %v1352 = vpop.permute.xlu0 %1351
    %1353 = vrot.lane.b32.xlu0 %v18, 44
    %v1354 = vpop.permute.xlu0 %1353
    %1355 = vrot.lane.b32.xlu0 %v643, 32
    %v1356 = vpop.permute.xlu0 %1355
    %1357 = vrot.lane.b32.xlu0 %v649, 32
    %v1358 = vpop.permute.xlu0 %1357
    %v1360 = vsel %vm739, %v1352, 0
    %v1362 = vsel %vm739, %v1354, 0
    %v1364 = vsel %vm143, %v1358, 0
    %1366 = vmatprep.subr.mxu0 0.0
    %1367 = vmatpush1.msra.mxu0 0.0
    %1368 = vmatprep.subr.mxu0 0.0
    %1369 = vmatpush1.msra.mxu0 0.0
    %1370 = vmatprep.subr.mxu0 0.0
    %1371 = vmatpush1.msra.mxu0 0.0
    %1372 = vmatprep.subr.mxu0 0.0
    %1373 = vmatpush1.msra.mxu0 0.0
    %1374 = vmatprep.subr.mxu0 0.0
    %1375 = vmatpush1.msra.mxu0 0.0
    %1376 = vmatprep.subr.mxu0 0.0
    %1377 = vmatpush1.msra.mxu0 0.0
    %1378 = vmatprep.subr.mxu0 0.0
    %1379 = vmatpush1.msra.mxu0 0.0
    %1380 = vmatprep.subr.mxu0 0.0
    %1381 = vmatpush1.msra.mxu0 0.0
    %1382 = vmatprep.subr.mxu0 0.0
    %1383 = vmatpush1.msra.mxu0 0.0
    %1384 = vmatprep.subr.mxu0 0.0
    %1385 = vmatpush1.msra.mxu0 0.0
    %1386 = vmatprep.subr.mxu0 0.0
    %1387 = vmatpush1.msra.mxu0 0.0
    %1388 = vmatprep.subr.mxu0 0.0
    %1389 = vmatpush1.msra.mxu0 0.0
    %1390 = vmatprep.subr.mxu0 0.0
    %1391 = vmatpush1.msra.mxu0 0.0
    %1392 = vmatprep.subr.mxu0 0.0
    %1393 = vmatpush1.msra.mxu0 0.0
    %1394 = vmatprep.subr.mxu0 0.0
    %1395 = vmatpush1.msra.mxu0 %v1364
    %1396 = vmatprep.subr.mxu0 0.0
    %1397 = vmatpush1.msra.mxu0 %v1356
    %1398 = vmatprep.subr.mxu0 0.0
    %1399 = vmatpush2.msra.mxu0 0.0
    %1400 = vmatprep.subr.mxu0 0.0
    %1401 = vmatpush2.msra.mxu0 0.0
    %1402 = vmatprep.subr.mxu0 0.0
    %1403 = vmatpush2.msra.mxu0 0.0
    %1404 = vmatprep.subr.mxu0 0.0
    %1405 = vmatpush2.msra.mxu0 0.0
    %1406 = vmatprep.subr.mxu0 0.0
    %1407 = vmatpush2.msra.mxu0 0.0
    %1408 = vmatprep.subr.mxu0 0.0
    %1409 = vmatpush2.msra.mxu0 0.0
    %1410 = vmatprep.subr.mxu0 0.0
    %1411 = vmatpush2.msra.mxu0 0.0
    %1412 = vmatprep.subr.mxu0 0.0
    %1413 = vmatpush2.msra.mxu0 0.0
    %1414 = vmatprep.subr.mxu0 0.0
    %1415 = vmatpush2.msra.mxu0 0.0
    %1416 = vmatprep.subr.mxu0 0.0
    %1417 = vmatpush2.msra.mxu0 0.0
    %1418 = vmatprep.subr.mxu0 0.0
    %1419 = vmatpush2.msra.mxu0 0.0
    %1420 = vmatprep.subr.mxu0 0.0
    %1421 = vmatpush2.msra.mxu0 0.0
    %1422 = vmatprep.subr.mxu0 0.0
    %1423 = vmatpush2.msra.mxu0 0.0
    %1424 = vmatprep.subr.mxu0 0.0
    %1425 = vmatpush2.msra.mxu0 0.0
    %1426 = vmatprep.subr.mxu0 0.0
    %1427 = vmatpush2.msra.mxu0 0.0
    %1428 = vmatprep.subr.mxu0 0.0
    %1429 = vmatpush2.msra.mxu0 0.0
    %1430 = vmatprep.mubr.f32.mxu0 0.0
    %1431 = vmatmul.mubr.f32.gmra.mxu0 %v1360
    %v1432 = vpop.f32.mrf.mxu0
    %v1433 = vadd.f32 0.0, %v1432
    %v1434 = vpop.f32.mrf.mxu0
    %1435 = vmatprep.mubr.f32.mxu0 0.0
    %1436 = vmatmul.mubr.f32.gmra.mxu0 %v1362
    %v1437 = vpop.f32.mrf.mxu0
    %v1438 = vadd.f32 0.0, %v1437
    %v1439 = vpop.f32.mrf.mxu0
    %1440 = vdwg.mxu0
    %v1441 = vadd.f32 %v1070, %v1433
    %v1442 = vadd.f32 %v1075, %v1438
    %1443 = vrot.lane.b32.xlu0 %v17, 32
    %v1444 = vpop.permute.xlu0 %1443
    %1445 = vrot.lane.b32.xlu0 %v18, 32
    %v1446 = vpop.permute.xlu0 %1445
    %v1447 = vsel %vm739, %v1444, 0
    %v1449 = vsel %vm739, %v1446, 0
    %v1452 = vsel %vm143, %v723, 0
    %1454 = vmatprep.subr.mxu0 0.0
    %1455 = vmatpush1.msra.mxu0 0.0
    %1456 = vmatprep.subr.mxu0 0.0
    %1457 = vmatpush1.msra.mxu0 0.0
    %1458 = vmatprep.subr.mxu0 0.0
    %1459 = vmatpush1.msra.mxu0 0.0
    %1460 = vmatprep.subr.mxu0 0.0
    %1461 = vmatpush1.msra.mxu0 0.0
    %1462 = vmatprep.subr.mxu0 0.0
    %1463 = vmatpush1.msra.mxu0 0.0
    %1464 = vmatprep.subr.mxu0 0.0
    %1465 = vmatpush1.msra.mxu0 0.0
    %1466 = vmatprep.subr.mxu0 0.0
    %1467 = vmatpush1.msra.mxu0 0.0
    %1468 = vmatprep.subr.mxu0 0.0
    %1469 = vmatpush1.msra.mxu0 0.0
    %1470 = vmatprep.subr.mxu0 0.0
    %1471 = vmatpush1.msra.mxu0 0.0
    %1472 = vmatprep.subr.mxu0 0.0
    %1473 = vmatpush1.msra.mxu0 0.0
    %1474 = vmatprep.subr.mxu0 0.0
    %1475 = vmatpush1.msra.mxu0 0.0
    %1476 = vmatprep.subr.mxu0 0.0
    %1477 = vmatpush1.msra.mxu0 0.0
    %1478 = vmatprep.subr.mxu0 0.0
    %1479 = vmatpush1.msra.mxu0 0.0
    %1480 = vmatprep.subr.mxu0 0.0
    %1481 = vmatpush1.msra.mxu0 0.0
    %1482 = vmatprep.subr.mxu0 0.0
    %1483 = vmatpush1.msra.mxu0 %v1452
    %1484 = vmatprep.subr.mxu0 0.0
    %1485 = vmatpush1.msra.mxu0 %v718
    %1486 = vmatprep.subr.mxu0 0.0
    %1487 = vmatpush2.msra.mxu0 0.0
    %1488 = vmatprep.subr.mxu0 0.0
    %1489 = vmatpush2.msra.mxu0 0.0
    %1490 = vmatprep.subr.mxu0 0.0
    %1491 = vmatpush2.msra.mxu0 0.0
    %1492 = vmatprep.subr.mxu0 0.0
    %1493 = vmatpush2.msra.mxu0 0.0
    %1494 = vmatprep.subr.mxu0 0.0
    %1495 = vmatpush2.msra.mxu0 0.0
    %1496 = vmatprep.subr.mxu0 0.0
    %1497 = vmatpush2.msra.mxu0 0.0
    %1498 = vmatprep.subr.mxu0 0.0
    %1499 = vmatpush2.msra.mxu0 0.0
    %1500 = vmatprep.subr.mxu0 0.0
    %1501 = vmatpush2.msra.mxu0 0.0
    %1502 = vmatprep.subr.mxu0 0.0
    %1503 = vmatpush2.msra.mxu0 0.0
    %1504 = vmatprep.subr.mxu0 0.0
    %1505 = vmatpush2.msra.mxu0 0.0
    %1506 = vmatprep.subr.mxu0 0.0
    %1507 = vmatpush2.msra.mxu0 0.0
    %1508 = vmatprep.subr.mxu0 0.0
    %1509 = vmatpush2.msra.mxu0 0.0
    %1510 = vmatprep.subr.mxu0 0.0
    %1511 = vmatpush2.msra.mxu0 0.0
    %1512 = vmatprep.subr.mxu0 0.0
    %1513 = vmatpush2.msra.mxu0 0.0
    %1514 = vmatprep.subr.mxu0 0.0
    %1515 = vmatpush2.msra.mxu0 0.0
    %1516 = vmatprep.subr.mxu0 0.0
    %1517 = vmatpush2.msra.mxu0 0.0
    %1518 = vmatprep.mubr.f32.mxu0 0.0
    %1519 = vmatmul.mubr.f32.gmra.mxu0 %v1447
    %v1520 = vpop.f32.mrf.mxu0
    %v1521 = vadd.f32 0.0, %v1520
    %v1522 = vpop.f32.mrf.mxu0
    %1523 = vmatprep.mubr.f32.mxu0 0.0
    %1524 = vmatmul.mubr.f32.gmra.mxu0 %v1449
    %v1525 = vpop.f32.mrf.mxu0
    %v1526 = vadd.f32 0.0, %v1525
    %v1527 = vpop.f32.mrf.mxu0
    %1528 = vdwg.mxu0
    %v1529 = vadd.f32 %v1251, %v1521
    %v1530 = vadd.f32 %v1256, %v1526
    %v1531 = vadd.f32 %v1349, %v1441
    %v1532 = vadd.f32 %v1350, %v1442
    %v1533 = vadd.f32 %v1531, %v1529
    %v1534 = vadd.f32 %v1532, %v1530
    %1535 = vset.pattern.permute.xlu0 35
    %1536 = vperm.xlu0 %1535, %v15
    %v1537 = vpop.permute.xlu0 %1536
    %1539 = vset.pattern.permute.xlu0 35
    %1540 = vperm.xlu0 %1539, %v16
    %v1541 = vpop.permute.xlu0 %1540
    %v1543 = vadd.f32 %v1533, %v1537
    %v1544 = vadd.f32 %v1534, %v1541
    %vm1545 = vcmp.ge.f32.partialorder %v1543, 0.0
    %vm1546 = vcmp.ge.f32.partialorder %v1544, 0.0
    %v1547 = vmul.f32 %v1543, 0.02
    %v1548 = vmul.f32 %v1544, 0.02
    %v1549 = vsel %vm1545, %v1543, %v1547
    %v1550 = vsel %vm1546, %v1544, %v1548
    %v1551 = vsel %vm37, %v1549, 0.0
    %1552 = vadd.xlane.f32.xlu0 %v1551
    %v1553 = vpop.xlane.xlu0 %1552
    %vm1554 = vcmask 197632
    %v1555 = vsel %vm1554, %v1550, 0.0
    %1556 = vadd.xlane.f32.xlu0 %v1555
    %v1557 = vpop.xlane.xlu0 %1556
    %v1558 = vmul.f32 %v1553, 0.04
    %v1559 = vmul.f32 %v1557, 0.04
    %v1560 = vsub.f32 %v1549, %v1558
    %v1561 = vsub.f32 %v1550, %v1559
    %v1562 = vmul.f32 %v1560, %v1560
    %v1563 = vmul.f32 %v1561, %v1561
    %v1564 = vsel %vm37, %v1562, 0.0
    %1565 = vadd.xlane.f32.xlu0 %v1564
    %v1566 = vpop.xlane.xlu0 %1565
    %v1567 = vsel %vm1554, %v1563, 0.0
    %1568 = vadd.xlane.f32.xlu0 %v1567
    %v1569 = vpop.xlane.xlu0 %1568
    %v1570 = vmul.f32 %v1566, 0.04
    %v1571 = vmul.f32 %v1569, 0.04
    %v1572 = vadd.f32 %v1570, 1e-05
    %v1573 = vadd.f32 %v1571, 1e-05
    %v1574 = vrsqrt.pop %v1572
    %v1575 = vrsqrt.pop %v1573
    %v1576 = vmul.f32 %v15, %v1574
    %v1577 = vmul.f32 %v16, %v1575
    %1579 = vset.pattern.permute.xlu0 36
    %1580 = vperm.xlu0 %1579, %v1576
    %v1581 = vpop.permute.xlu0 %1580
    %1584 = vset.pattern.permute.xlu0 36
    %1585 = vperm.xlu0 %1584, %v1577
    %v1586 = vpop.permute.xlu0 %1585
    %v1588 = vmul.f32 %v1560, %v1581
    %v1589 = vmul.f32 %v1561, %v1586
    %1590 = vset.pattern.permute.xlu0 37
    %1591 = vperm.xlu0 %1590, %v15
    %v1592 = vpop.permute.xlu0 %1591
    %1594 = vset.pattern.permute.xlu0 37
    %1595 = vperm.xlu0 %1594, %v16
    %v1596 = vpop.permute.xlu0 %1595
    %v1598 = vadd.f32 %v1588, %v1592
    %v1599 = vadd.f32 %v1589, %v1596
    %v1600 = vld [vmem:[%s2] sm:$0xff]
    %v1601 = vld [vmem:[%s2 + $0x8] sm:$0xff]
    %v1602 = vld [vmem:[%s2 + $0x10] sm:$0xff]
    %v1603 = vld [vmem:[%s2 + $0x18] sm:$0x1]
    %s1604 = scalar_lea.vmem %s2, 32
    %v1605 = vld [vmem:[%s1604] sm:$0xff]
    %v1606 = vld [vmem:[%s1604 + $0x8] sm:$0xff]
    %v1607 = vld [vmem:[%s1604 + $0x10] sm:$0xff]
    %v1608 = vld [vmem:[%s1604 + $0x18] sm:$0x1]
    %v1610 = vrot.slane %v1598, 1
    %v1611 = vsel %vm37, %v1610, 0
    %v1614 = vsel %vm42, %v1608, 0
    %1616 = vmatprep.subr.mxu0 0.0
    %1617 = vmatpush1.msra.mxu0 0.0
    %1618 = vmatprep.subr.mxu0 0.0
    %1619 = vmatpush1.msra.mxu0 0.0
    %1620 = vmatprep.subr.mxu0 0.0
    %1621 = vmatpush1.msra.mxu0 0.0
    %1622 = vmatprep.subr.mxu0 0.0
    %1623 = vmatpush1.msra.mxu0 0.0
    %1624 = vmatprep.subr.mxu0 0.0
    %1625 = vmatpush1.msra.mxu0 0.0
    %1626 = vmatprep.subr.mxu0 0.0
    %1627 = vmatpush1.msra.mxu0 0.0
    %1628 = vmatprep.subr.mxu0 0.0
    %1629 = vmatpush1.msra.mxu0 0.0
    %1630 = vmatprep.subr.mxu0 0.0
    %1631 = vmatpush1.msra.mxu0 0.0
    %1632 = vmatprep.subr.mxu0 0.0
    %1633 = vmatpush1.msra.mxu0 0.0
    %1634 = vmatprep.subr.mxu0 0.0
    %1635 = vmatpush1.msra.mxu0 0.0
    %1636 = vmatprep.subr.mxu0 0.0
    %1637 = vmatpush1.msra.mxu0 0.0
    %1638 = vmatprep.subr.mxu0 0.0
    %1639 = vmatpush1.msra.mxu0 0.0
    %1640 = vmatprep.subr.mxu0 0.0
    %1641 = vmatpush1.msra.mxu0 %v1614
    %1642 = vmatprep.subr.mxu0 0.0
    %1643 = vmatpush1.msra.mxu0 %v1607
    %1644 = vmatprep.subr.mxu0 0.0
    %1645 = vmatpush1.msra.mxu0 %v1606
    %1646 = vmatprep.subr.mxu0 0.0
    %1647 = vmatpush1.msra.mxu0 %v1605
    %1648 = vmatprep.subr.mxu0 0.0
    %1649 = vmatpush2.msra.mxu0 0.0
    %1650 = vmatprep.subr.mxu0 0.0
    %1651 = vmatpush2.msra.mxu0 0.0
    %1652 = vmatprep.subr.mxu0 0.0
    %1653 = vmatpush2.msra.mxu0 0.0
    %1654 = vmatprep.subr.mxu0 0.0
    %1655 = vmatpush2.msra.mxu0 0.0
    %1656 = vmatprep.subr.mxu0 0.0
    %1657 = vmatpush2.msra.mxu0 0.0
    %1658 = vmatprep.subr.mxu0 0.0
    %1659 = vmatpush2.msra.mxu0 0.0
    %1660 = vmatprep.subr.mxu0 0.0
    %1661 = vmatpush2.msra.mxu0 0.0
    %1662 = vmatprep.subr.mxu0 0.0
    %1663 = vmatpush2.msra.mxu0 0.0
    %1664 = vmatprep.subr.mxu0 0.0
    %1665 = vmatpush2.msra.mxu0 0.0
    %1666 = vmatprep.subr.mxu0 0.0
    %1667 = vmatpush2.msra.mxu0 0.0
    %1668 = vmatprep.subr.mxu0 0.0
    %1669 = vmatpush2.msra.mxu0 0.0
    %1670 = vmatprep.subr.mxu0 0.0
    %1671 = vmatpush2.msra.mxu0 0.0
    %1672 = vmatprep.subr.mxu0 0.0
    %1673 = vmatpush2.msra.mxu0 0.0
    %1674 = vmatprep.subr.mxu0 0.0
    %1675 = vmatpush2.msra.mxu0 0.0
    %1676 = vmatprep.subr.mxu0 0.0
    %1677 = vmatpush2.msra.mxu0 0.0
    %1678 = vmatprep.subr.mxu0 0.0
    %1679 = vmatpush2.msra.mxu0 0.0
    %1680 = vmatprep.mubr.f32.mxu0 0.0
    %1681 = vmatmul.mubr.f32.gmra.mxu0 %v1611
    %v1682 = vpop.f32.mrf.mxu0
    %v1683 = vadd.f32 0.0, %v1682
    %v1684 = vpop.f32.mrf.mxu0
    %1685 = vdwg.mxu0
    %s1686 = scalar_lea.vmem %s2, 64
    %v1687 = vld [vmem:[%s1686] sm:$0xff]
    %v1688 = vld [vmem:[%s1686 + $0x8] sm:$0xff]
    %v1689 = vld [vmem:[%s1686 + $0x10] sm:$0xff]
    %v1690 = vld [vmem:[%s1686 + $0x18] sm:$0x1]
    %s1691 = scalar_lea.vmem %s2, 96
    %v1692 = vld [vmem:[%s1691] sm:$0xff]
    %v1693 = vld [vmem:[%s1691 + $0x8] sm:$0xff]
    %v1694 = vld [vmem:[%s1691 + $0x10] sm:$0xff]
    %v1695 = vld [vmem:[%s1691 + $0x18] sm:$0x1]
    %v1696 = vrot.slane %v1598, 3
    %v1697 = vsel %vm37, %v1696, 0
    %v1700 = vsel %vm42, %v1695, 0
    %1702 = vmatprep.subr.mxu0 0.0
    %1703 = vmatpush1.msra.mxu0 0.0
    %1704 = vmatprep.subr.mxu0 0.0
    %1705 = vmatpush1.msra.mxu0 0.0
    %1706 = vmatprep.subr.mxu0 0.0
    %1707 = vmatpush1.msra.mxu0 0.0
    %1708 = vmatprep.subr.mxu0 0.0
    %1709 = vmatpush1.msra.mxu0 0.0
    %1710 = vmatprep.subr.mxu0 0.0
    %1711 = vmatpush1.msra.mxu0 0.0
    %1712 = vmatprep.subr.mxu0 0.0
    %1713 = vmatpush1.msra.mxu0 0.0
    %1714 = vmatprep.subr.mxu0 0.0
    %1715 = vmatpush1.msra.mxu0 0.0
    %1716 = vmatprep.subr.mxu0 0.0
    %1717 = vmatpush1.msra.mxu0 0.0
    %1718 = vmatprep.subr.mxu0 0.0
    %1719 = vmatpush1.msra.mxu0 0.0
    %1720 = vmatprep.subr.mxu0 0.0
    %1721 = vmatpush1.msra.mxu0 0.0
    %1722 = vmatprep.subr.mxu0 0.0
    %1723 = vmatpush1.msra.mxu0 0.0
    %1724 = vmatprep.subr.mxu0 0.0
    %1725 = vmatpush1.msra.mxu0 0.0
    %1726 = vmatprep.subr.mxu0 0.0
    %1727 = vmatpush1.msra.mxu0 %v1700
    %1728 = vmatprep.subr.mxu0 0.0
    %1729 = vmatpush1.msra.mxu0 %v1694
    %1730 = vmatprep.subr.mxu0 0.0
    %1731 = vmatpush1.msra.mxu0 %v1693
    %1732 = vmatprep.subr.mxu0 0.0
    %1733 = vmatpush1.msra.mxu0 %v1692
    %1734 = vmatprep.subr.mxu0 0.0
    %1735 = vmatpush2.msra.mxu0 0.0
    %1736 = vmatprep.subr.mxu0 0.0
    %1737 = vmatpush2.msra.mxu0 0.0
    %1738 = vmatprep.subr.mxu0 0.0
    %1739 = vmatpush2.msra.mxu0 0.0
    %1740 = vmatprep.subr.mxu0 0.0
    %1741 = vmatpush2.msra.mxu0 0.0
    %1742 = vmatprep.subr.mxu0 0.0
    %1743 = vmatpush2.msra.mxu0 0.0
    %1744 = vmatprep.subr.mxu0 0.0
    %1745 = vmatpush2.msra.mxu0 0.0
    %1746 = vmatprep.subr.mxu0 0.0
    %1747 = vmatpush2.msra.mxu0 0.0
    %1748 = vmatprep.subr.mxu0 0.0
    %1749 = vmatpush2.msra.mxu0 0.0
    %1750 = vmatprep.subr.mxu0 0.0
    %1751 = vmatpush2.msra.mxu0 0.0
    %1752 = vmatprep.subr.mxu0 0.0
    %1753 = vmatpush2.msra.mxu0 0.0
    %1754 = vmatprep.subr.mxu0 0.0
    %1755 = vmatpush2.msra.mxu0 0.0
    %1756 = vmatprep.subr.mxu0 0.0
    %1757 = vmatpush2.msra.mxu0 0.0
    %1758 = vmatprep.subr.mxu0 0.0
    %1759 = vmatpush2.msra.mxu0 0.0
    %1760 = vmatprep.subr.mxu0 0.0
    %1761 = vmatpush2.msra.mxu0 0.0
    %1762 = vmatprep.subr.mxu0 0.0
    %1763 = vmatpush2.msra.mxu0 0.0
    %1764 = vmatprep.subr.mxu0 0.0
    %1765 = vmatpush2.msra.mxu0 0.0
    %1766 = vmatprep.mubr.f32.mxu0 0.0
    %1767 = vmatmul.mubr.f32.gmra.mxu0 %v1697
    %v1768 = vpop.f32.mrf.mxu0
    %v1769 = vadd.f32 0.0, %v1768
    %v1770 = vpop.f32.mrf.mxu0
    %1771 = vdwg.mxu0
    %s1772 = scalar_lea.vmem %s2, 128
    %v1773 = vld [vmem:[%s1772] sm:$0xff]
    %v1774 = vld [vmem:[%s1772 + $0x8] sm:$0xff]
    %v1775 = vld [vmem:[%s1772 + $0x10] sm:$0xff]
    %v1776 = vld [vmem:[%s1772 + $0x18] sm:$0x1]
    %s1777 = scalar_lea.vmem %s2, 160
    %v1778 = vld [vmem:[%s1777] sm:$0xff]
    %v1779 = vld [vmem:[%s1777 + $0x8] sm:$0xff]
    %v1780 = vld [vmem:[%s1777 + $0x10] sm:$0xff]
    %v1781 = vld [vmem:[%s1777 + $0x18] sm:$0x1]
    %v1782 = vrot.slane %v1598, 5
    %v1783 = vsel %vm37, %v1782, 0
    %v1786 = vsel %vm42, %v1781, 0
    %1788 = vmatprep.subr.mxu0 0.0
    %1789 = vmatpush1.msra.mxu0 0.0
    %1790 = vmatprep.subr.mxu0 0.0
    %1791 = vmatpush1.msra.mxu0 0.0
    %1792 = vmatprep.subr.mxu0 0.0
    %1793 = vmatpush1.msra.mxu0 0.0
    %1794 = vmatprep.subr.mxu0 0.0
    %1795 = vmatpush1.msra.mxu0 0.0
    %1796 = vmatprep.subr.mxu0 0.0
    %1797 = vmatpush1.msra.mxu0 0.0
    %1798 = vmatprep.subr.mxu0 0.0
    %1799 = vmatpush1.msra.mxu0 0.0
    %1800 = vmatprep.subr.mxu0 0.0
    %1801 = vmatpush1.msra.mxu0 0.0
    %1802 = vmatprep.subr.mxu0 0.0
    %1803 = vmatpush1.msra.mxu0 0.0
    %1804 = vmatprep.subr.mxu0 0.0
    %1805 = vmatpush1.msra.mxu0 0.0
    %1806 = vmatprep.subr.mxu0 0.0
    %1807 = vmatpush1.msra.mxu0 0.0
    %1808 = vmatprep.subr.mxu0 0.0
    %1809 = vmatpush1.msra.mxu0 0.0
    %1810 = vmatprep.subr.mxu0 0.0
    %1811 = vmatpush1.msra.mxu0 0.0
    %1812 = vmatprep.subr.mxu0 0.0
    %1813 = vmatpush1.msra.mxu0 %v1786
    %1814 = vmatprep.subr.mxu0 0.0
    %1815 = vmatpush1.msra.mxu0 %v1780
    %1816 = vmatprep.subr.mxu0 0.0
    %1817 = vmatpush1.msra.mxu0 %v1779
    %1818 = vmatprep.subr.mxu0 0.0
    %1819 = vmatpush1.msra.mxu0 %v1778
    %1820 = vmatprep.subr.mxu0 0.0
    %1821 = vmatpush2.msra.mxu0 0.0
    %1822 = vmatprep.subr.mxu0 0.0
    %1823 = vmatpush2.msra.mxu0 0.0
    %1824 = vmatprep.subr.mxu0 0.0
    %1825 = vmatpush2.msra.mxu0 0.0
    %1826 = vmatprep.subr.mxu0 0.0
    %1827 = vmatpush2.msra.mxu0 0.0
    %1828 = vmatprep.subr.mxu0 0.0
    %1829 = vmatpush2.msra.mxu0 0.0
    %1830 = vmatprep.subr.mxu0 0.0
    %1831 = vmatpush2.msra.mxu0 0.0
    %1832 = vmatprep.subr.mxu0 0.0
    %1833 = vmatpush2.msra.mxu0 0.0
    %1834 = vmatprep.subr.mxu0 0.0
    %1835 = vmatpush2.msra.mxu0 0.0
    %1836 = vmatprep.subr.mxu0 0.0
    %1837 = vmatpush2.msra.mxu0 0.0
    %1838 = vmatprep.subr.mxu0 0.0
    %1839 = vmatpush2.msra.mxu0 0.0
    %1840 = vmatprep.subr.mxu0 0.0
    %1841 = vmatpush2.msra.mxu0 0.0
    %1842 = vmatprep.subr.mxu0 0.0
    %1843 = vmatpush2.msra.mxu0 0.0
    %1844 = vmatprep.subr.mxu0 0.0
    %1845 = vmatpush2.msra.mxu0 0.0
    %1846 = vmatprep.subr.mxu0 0.0
    %1847 = vmatpush2.msra.mxu0 0.0
    %1848 = vmatprep.subr.mxu0 0.0
    %1849 = vmatpush2.msra.mxu0 0.0
    %1850 = vmatprep.subr.mxu0 0.0
    %1851 = vmatpush2.msra.mxu0 0.0
    %1852 = vmatprep.mubr.f32.mxu0 0.0
    %1853 = vmatmul.mubr.f32.gmra.mxu0 %v1783
    %v1854 = vpop.f32.mrf.mxu0
    %v1855 = vadd.f32 0.0, %v1854
    %v1856 = vpop.f32.mrf.mxu0
    %1857 = vdwg.mxu0
    %s1858 = scalar_lea.vmem %s2, 192
    %v1859 = vld [vmem:[%s1858] sm:$0xff]
    %v1860 = vld [vmem:[%s1858 + $0x8] sm:$0xff]
    %v1861 = vld [vmem:[%s1858 + $0x10] sm:$0xff]
    %v1862 = vld [vmem:[%s1858 + $0x18] sm:$0x1]
    %s1863 = scalar_lea.vmem %s2, 224
    %v1864 = vld [vmem:[%s1863] sm:$0xff]
    %v1865 = vld [vmem:[%s1863 + $0x8] sm:$0xff]
    %v1866 = vld [vmem:[%s1863 + $0x10] sm:$0xff]
    %v1867 = vld [vmem:[%s1863 + $0x18] sm:$0x1]
    %v1868 = vrot.slane %v1598, 7
    %v1869 = vsel %vm37, %v1868, 0
    %v1872 = vsel %vm42, %v1867, 0
    %1874 = vmatprep.subr.mxu0 0.0
    %1875 = vmatpush1.msra.mxu0 0.0
    %1876 = vmatprep.subr.mxu0 0.0
    %1877 = vmatpush1.msra.mxu0 0.0
    %1878 = vmatprep.subr.mxu0 0.0
    %1879 = vmatpush1.msra.mxu0 0.0
    %1880 = vmatprep.subr.mxu0 0.0
    %1881 = vmatpush1.msra.mxu0 0.0
    %1882 = vmatprep.subr.mxu0 0.0
    %1883 = vmatpush1.msra.mxu0 0.0
    %1884 = vmatprep.subr.mxu0 0.0
    %1885 = vmatpush1.msra.mxu0 0.0
    %1886 = vmatprep.subr.mxu0 0.0
    %1887 = vmatpush1.msra.mxu0 0.0
    %1888 = vmatprep.subr.mxu0 0.0
    %1889 = vmatpush1.msra.mxu0 0.0
    %1890 = vmatprep.subr.mxu0 0.0
    %1891 = vmatpush1.msra.mxu0 0.0
    %1892 = vmatprep.subr.mxu0 0.0
    %1893 = vmatpush1.msra.mxu0 0.0
    %1894 = vmatprep.subr.mxu0 0.0
    %1895 = vmatpush1.msra.mxu0 0.0
    %1896 = vmatprep.subr.mxu0 0.0
    %1897 = vmatpush1.msra.mxu0 0.0
    %1898 = vmatprep.subr.mxu0 0.0
    %1899 = vmatpush1.msra.mxu0 %v1872
    %1900 = vmatprep.subr.mxu0 0.0
    %1901 = vmatpush1.msra.mxu0 %v1866
    %1902 = vmatprep.subr.mxu0 0.0
    %1903 = vmatpush1.msra.mxu0 %v1865
    %1904 = vmatprep.subr.mxu0 0.0
    %1905 = vmatpush1.msra.mxu0 %v1864
    %1906 = vmatprep.subr.mxu0 0.0
    %1907 = vmatpush2.msra.mxu0 0.0
    %1908 = vmatprep.subr.mxu0 0.0
    %1909 = vmatpush2.msra.mxu0 0.0
    %1910 = vmatprep.subr.mxu0 0.0
    %1911 = vmatpush2.msra.mxu0 0.0
    %1912 = vmatprep.subr.mxu0 0.0
    %1913 = vmatpush2.msra.mxu0 0.0
    %1914 = vmatprep.subr.mxu0 0.0
    %1915 = vmatpush2.msra.mxu0 0.0
    %1916 = vmatprep.subr.mxu0 0.0
    %1917 = vmatpush2.msra.mxu0 0.0
    %1918 = vmatprep.subr.mxu0 0.0
    %1919 = vmatpush2.msra.mxu0 0.0
    %1920 = vmatprep.subr.mxu0 0.0
    %1921 = vmatpush2.msra.mxu0 0.0
    %1922 = vmatprep.subr.mxu0 0.0
    %1923 = vmatpush2.msra.mxu0 0.0
    %1924 = vmatprep.subr.mxu0 0.0
    %1925 = vmatpush2.msra.mxu0 0.0
    %1926 = vmatprep.subr.mxu0 0.0
    %1927 = vmatpush2.msra.mxu0 0.0
    %1928 = vmatprep.subr.mxu0 0.0
    %1929 = vmatpush2.msra.mxu0 0.0
    %1930 = vmatprep.subr.mxu0 0.0
    %1931 = vmatpush2.msra.mxu0 0.0
    %1932 = vmatprep.subr.mxu0 0.0
    %1933 = vmatpush2.msra.mxu0 0.0
    %1934 = vmatprep.subr.mxu0 0.0
    %1935 = vmatpush2.msra.mxu0 0.0
    %1936 = vmatprep.subr.mxu0 0.0
    %1937 = vmatpush2.msra.mxu0 0.0
    %1938 = vmatprep.mubr.f32.mxu0 0.0
    %1939 = vmatmul.mubr.f32.gmra.mxu0 %v1869
    %v1940 = vpop.f32.mrf.mxu0
    %v1941 = vadd.f32 0.0, %v1940
    %v1942 = vpop.f32.mrf.mxu0
    %1943 = vdwg.mxu0
    %s1944 = scalar_lea.vmem %s2, 256
    %v1945 = vld [vmem:[%s1944] sm:$0xff]
    %v1946 = vld [vmem:[%s1944 + $0x8] sm:$0xff]
    %v1947 = vld [vmem:[%s1944 + $0x10] sm:$0xff]
    %v1948 = vld [vmem:[%s1944 + $0x18] sm:$0x1]
    %s1949 = scalar_lea.vmem %s2, 288
    %v1950 = vld [vmem:[%s1949] sm:$0xff]
    %v1951 = vld [vmem:[%s1949 + $0x8] sm:$0xff]
    %v1952 = vld [vmem:[%s1949 + $0x10] sm:$0xff]
    %v1953 = vld [vmem:[%s1949 + $0x18] sm:$0x1]
    %v1955 = vrot.slane %v1599, 1
    %v1956 = vsel %vm37, %v1955, 0
    %v1959 = vsel %vm42, %v1953, 0
    %1961 = vmatprep.subr.mxu0 0.0
    %1962 = vmatpush1.msra.mxu0 0.0
    %1963 = vmatprep.subr.mxu0 0.0
    %1964 = vmatpush1.msra.mxu0 0.0
    %1965 = vmatprep.subr.mxu0 0.0
    %1966 = vmatpush1.msra.mxu0 0.0
    %1967 = vmatprep.subr.mxu0 0.0
    %1968 = vmatpush1.msra.mxu0 0.0
    %1969 = vmatprep.subr.mxu0 0.0
    %1970 = vmatpush1.msra.mxu0 0.0
    %1971 = vmatprep.subr.mxu0 0.0
    %1972 = vmatpush1.msra.mxu0 0.0
    %1973 = vmatprep.subr.mxu0 0.0
    %1974 = vmatpush1.msra.mxu0 0.0
    %1975 = vmatprep.subr.mxu0 0.0
    %1976 = vmatpush1.msra.mxu0 0.0
    %1977 = vmatprep.subr.mxu0 0.0
    %1978 = vmatpush1.msra.mxu0 0.0
    %1979 = vmatprep.subr.mxu0 0.0
    %1980 = vmatpush1.msra.mxu0 0.0
    %1981 = vmatprep.subr.mxu0 0.0
    %1982 = vmatpush1.msra.mxu0 0.0
    %1983 = vmatprep.subr.mxu0 0.0
    %1984 = vmatpush1.msra.mxu0 0.0
    %1985 = vmatprep.subr.mxu0 0.0
    %1986 = vmatpush1.msra.mxu0 %v1959
    %1987 = vmatprep.subr.mxu0 0.0
    %1988 = vmatpush1.msra.mxu0 %v1952
    %1989 = vmatprep.subr.mxu0 0.0
    %1990 = vmatpush1.msra.mxu0 %v1951
    %1991 = vmatprep.subr.mxu0 0.0
    %1992 = vmatpush1.msra.mxu0 %v1950
    %1993 = vmatprep.subr.mxu0 0.0
    %1994 = vmatpush2.msra.mxu0 0.0
    %1995 = vmatprep.subr.mxu0 0.0
    %1996 = vmatpush2.msra.mxu0 0.0
    %1997 = vmatprep.subr.mxu0 0.0
    %1998 = vmatpush2.msra.mxu0 0.0
    %1999 = vmatprep.subr.mxu0 0.0
    %2000 = vmatpush2.msra.mxu0 0.0
    %2001 = vmatprep.subr.mxu0 0.0
    %2002 = vmatpush2.msra.mxu0 0.0
    %2003 = vmatprep.subr.mxu0 0.0
    %2004 = vmatpush2.msra.mxu0 0.0
    %2005 = vmatprep.subr.mxu0 0.0
    %2006 = vmatpush2.msra.mxu0 0.0
    %2007 = vmatprep.subr.mxu0 0.0
    %2008 = vmatpush2.msra.mxu0 0.0
    %2009 = vmatprep.subr.mxu0 0.0
    %2010 = vmatpush2.msra.mxu0 0.0
    %2011 = vmatprep.subr.mxu0 0.0
    %2012 = vmatpush2.msra.mxu0 0.0
    %2013 = vmatprep.subr.mxu0 0.0
    %2014 = vmatpush2.msra.mxu0 0.0
    %2015 = vmatprep.subr.mxu0 0.0
    %2016 = vmatpush2.msra.mxu0 0.0
    %2017 = vmatprep.subr.mxu0 0.0
    %2018 = vmatpush2.msra.mxu0 0.0
    %2019 = vmatprep.subr.mxu0 0.0
    %2020 = vmatpush2.msra.mxu0 0.0
    %2021 = vmatprep.subr.mxu0 0.0
    %2022 = vmatpush2.msra.mxu0 0.0
    %2023 = vmatprep.subr.mxu0 0.0
    %2024 = vmatpush2.msra.mxu0 0.0
    %2025 = vmatprep.mubr.f32.mxu0 0.0
    %2026 = vmatmul.mubr.f32.gmra.mxu0 %v1956
    %v2027 = vpop.f32.mrf.mxu0
    %v2028 = vadd.f32 0.0, %v2027
    %v2029 = vpop.f32.mrf.mxu0
    %2030 = vdwg.mxu0
    %v2031 = vsel %vm37, %v1598, 0
    %v2034 = vsel %vm42, %v1603, 0
    %2036 = vmatprep.subr.mxu0 0.0
    %2037 = vmatpush1.msra.mxu0 0.0
    %2038 = vmatprep.subr.mxu0 0.0
    %2039 = vmatpush1.msra.mxu0 0.0
    %2040 = vmatprep.subr.mxu0 0.0
    %2041 = vmatpush1.msra.mxu0 0.0
    %2042 = vmatprep.subr.mxu0 0.0
    %2043 = vmatpush1.msra.mxu0 0.0
    %2044 = vmatprep.subr.mxu0 0.0
    %2045 = vmatpush1.msra.mxu0 0.0
    %2046 = vmatprep.subr.mxu0 0.0
    %2047 = vmatpush1.msra.mxu0 0.0
    %2048 = vmatprep.subr.mxu0 0.0
    %2049 = vmatpush1.msra.mxu0 0.0
    %2050 = vmatprep.subr.mxu0 0.0
    %2051 = vmatpush1.msra.mxu0 0.0
    %2052 = vmatprep.subr.mxu0 0.0
    %2053 = vmatpush1.msra.mxu0 0.0
    %2054 = vmatprep.subr.mxu0 0.0
    %2055 = vmatpush1.msra.mxu0 0.0
    %2056 = vmatprep.subr.mxu0 0.0
    %2057 = vmatpush1.msra.mxu0 0.0
    %2058 = vmatprep.subr.mxu0 0.0
    %2059 = vmatpush1.msra.mxu0 0.0
    %2060 = vmatprep.subr.mxu0 0.0
    %2061 = vmatpush1.msra.mxu0 %v2034
    %2062 = vmatprep.subr.mxu0 0.0
    %2063 = vmatpush1.msra.mxu0 %v1602
    %2064 = vmatprep.subr.mxu0 0.0
    %2065 = vmatpush1.msra.mxu0 %v1601
    %2066 = vmatprep.subr.mxu0 0.0
    %2067 = vmatpush1.msra.mxu0 %v1600
    %2068 = vmatprep.subr.mxu0 0.0
    %2069 = vmatpush2.msra.mxu0 0.0
    %2070 = vmatprep.subr.mxu0 0.0
    %2071 = vmatpush2.msra.mxu0 0.0
    %2072 = vmatprep.subr.mxu0 0.0
    %2073 = vmatpush2.msra.mxu0 0.0
    %2074 = vmatprep.subr.mxu0 0.0
    %2075 = vmatpush2.msra.mxu0 0.0
    %2076 = vmatprep.subr.mxu0 0.0
    %2077 = vmatpush2.msra.mxu0 0.0
    %2078 = vmatprep.subr.mxu0 0.0
    %2079 = vmatpush2.msra.mxu0 0.0
    %2080 = vmatprep.subr.mxu0 0.0
    %2081 = vmatpush2.msra.mxu0 0.0
    %2082 = vmatprep.subr.mxu0 0.0
    %2083 = vmatpush2.msra.mxu0 0.0
    %2084 = vmatprep.subr.mxu0 0.0
    %2085 = vmatpush2.msra.mxu0 0.0
    %2086 = vmatprep.subr.mxu0 0.0
    %2087 = vmatpush2.msra.mxu0 0.0
    %2088 = vmatprep.subr.mxu0 0.0
    %2089 = vmatpush2.msra.mxu0 0.0
    %2090 = vmatprep.subr.mxu0 0.0
    %2091 = vmatpush2.msra.mxu0 0.0
    %2092 = vmatprep.subr.mxu0 0.0
    %2093 = vmatpush2.msra.mxu0 0.0
    %2094 = vmatprep.subr.mxu0 0.0
    %2095 = vmatpush2.msra.mxu0 0.0
    %2096 = vmatprep.subr.mxu0 0.0
    %2097 = vmatpush2.msra.mxu0 0.0
    %2098 = vmatprep.subr.mxu0 0.0
    %2099 = vmatpush2.msra.mxu0 0.0
    %2100 = vmatprep.mubr.f32.mxu0 0.0
    %2101 = vmatmul.mubr.f32.gmra.mxu0 %v2031
    %v2102 = vpop.f32.mrf.mxu0
    %v2103 = vadd.f32 %v1683, %v2102
    %v2104 = vpop.f32.mrf.mxu0
    %2105 = vdwg.mxu0
    %v2106 = vrot.slane %v1598, 2
    %v2107 = vsel %vm37, %v2106, 0
    %v2110 = vsel %vm42, %v1690, 0
    %2112 = vmatprep.subr.mxu0 0.0
    %2113 = vmatpush1.msra.mxu0 0.0
    %2114 = vmatprep.subr.mxu0 0.0
    %2115 = vmatpush1.msra.mxu0 0.0
    %2116 = vmatprep.subr.mxu0 0.0
    %2117 = vmatpush1.msra.mxu0 0.0
    %2118 = vmatprep.subr.mxu0 0.0
    %2119 = vmatpush1.msra.mxu0 0.0
    %2120 = vmatprep.subr.mxu0 0.0
    %2121 = vmatpush1.msra.mxu0 0.0
    %2122 = vmatprep.subr.mxu0 0.0
    %2123 = vmatpush1.msra.mxu0 0.0
    %2124 = vmatprep.subr.mxu0 0.0
    %2125 = vmatpush1.msra.mxu0 0.0
    %2126 = vmatprep.subr.mxu0 0.0
    %2127 = vmatpush1.msra.mxu0 0.0
    %2128 = vmatprep.subr.mxu0 0.0
    %2129 = vmatpush1.msra.mxu0 0.0
    %2130 = vmatprep.subr.mxu0 0.0
    %2131 = vmatpush1.msra.mxu0 0.0
    %2132 = vmatprep.subr.mxu0 0.0
    %2133 = vmatpush1.msra.mxu0 0.0
    %2134 = vmatprep.subr.mxu0 0.0
    %2135 = vmatpush1.msra.mxu0 0.0
    %2136 = vmatprep.subr.mxu0 0.0
    %2137 = vmatpush1.msra.mxu0 %v2110
    %2138 = vmatprep.subr.mxu0 0.0
    %2139 = vmatpush1.msra.mxu0 %v1689
    %2140 = vmatprep.subr.mxu0 0.0
    %2141 = vmatpush1.msra.mxu0 %v1688
    %2142 = vmatprep.subr.mxu0 0.0
    %2143 = vmatpush1.msra.mxu0 %v1687
    %2144 = vmatprep.subr.mxu0 0.0
    %2145 = vmatpush2.msra.mxu0 0.0
    %2146 = vmatprep.subr.mxu0 0.0
    %2147 = vmatpush2.msra.mxu0 0.0
    %2148 = vmatprep.subr.mxu0 0.0
    %2149 = vmatpush2.msra.mxu0 0.0
    %2150 = vmatprep.subr.mxu0 0.0
    %2151 = vmatpush2.msra.mxu0 0.0
    %2152 = vmatprep.subr.mxu0 0.0
    %2153 = vmatpush2.msra.mxu0 0.0
    %2154 = vmatprep.subr.mxu0 0.0
    %2155 = vmatpush2.msra.mxu0 0.0
    %2156 = vmatprep.subr.mxu0 0.0
    %2157 = vmatpush2.msra.mxu0 0.0
    %2158 = vmatprep.subr.mxu0 0.0
    %2159 = vmatpush2.msra.mxu0 0.0
    %2160 = vmatprep.subr.mxu0 0.0
    %2161 = vmatpush2.msra.mxu0 0.0
    %2162 = vmatprep.subr.mxu0 0.0
    %2163 = vmatpush2.msra.mxu0 0.0
    %2164 = vmatprep.subr.mxu0 0.0
    %2165 = vmatpush2.msra.mxu0 0.0
    %2166 = vmatprep.subr.mxu0 0.0
    %2167 = vmatpush2.msra.mxu0 0.0
    %2168 = vmatprep.subr.mxu0 0.0
    %2169 = vmatpush2.msra.mxu0 0.0
    %2170 = vmatprep.subr.mxu0 0.0
    %2171 = vmatpush2.msra.mxu0 0.0
    %2172 = vmatprep.subr.mxu0 0.0
    %2173 = vmatpush2.msra.mxu0 0.0
    %2174 = vmatprep.subr.mxu0 0.0
    %2175 = vmatpush2.msra.mxu0 0.0
    %2176 = vmatprep.mubr.f32.mxu0 0.0
    %2177 = vmatmul.mubr.f32.gmra.mxu0 %v2107
    %v2178 = vpop.f32.mrf.mxu0
    %v2179 = vadd.f32 %v1769, %v2178
    %v2180 = vpop.f32.mrf.mxu0
    %2181 = vdwg.mxu0
    %v2182 = vrot.slane %v1598, 4
    %v2183 = vsel %vm37, %v2182, 0
    %v2186 = vsel %vm42, %v1776, 0
    %2188 = vmatprep.subr.mxu0 0.0
    %2189 = vmatpush1.msra.mxu0 0.0
    %2190 = vmatprep.subr.mxu0 0.0
    %2191 = vmatpush1.msra.mxu0 0.0
    %2192 = vmatprep.subr.mxu0 0.0
    %2193 = vmatpush1.msra.mxu0 0.0
    %2194 = vmatprep.subr.mxu0 0.0
    %2195 = vmatpush1.msra.mxu0 0.0
    %2196 = vmatprep.subr.mxu0 0.0
    %2197 = vmatpush1.msra.mxu0 0.0
    %2198 = vmatprep.subr.mxu0 0.0
    %2199 = vmatpush1.msra.mxu0 0.0
    %2200 = vmatprep.subr.mxu0 0.0
    %2201 = vmatpush1.msra.mxu0 0.0
    %2202 = vmatprep.subr.mxu0 0.0
    %2203 = vmatpush1.msra.mxu0 0.0
    %2204 = vmatprep.subr.mxu0 0.0
    %2205 = vmatpush1.msra.mxu0 0.0
    %2206 = vmatprep.subr.mxu0 0.0
    %2207 = vmatpush1.msra.mxu0 0.0
    %2208 = vmatprep.subr.mxu0 0.0
    %2209 = vmatpush1.msra.mxu0 0.0
    %2210 = vmatprep.subr.mxu0 0.0
    %2211 = vmatpush1.msra.mxu0 0.0
    %2212 = vmatprep.subr.mxu0 0.0
    %2213 = vmatpush1.msra.mxu0 %v2186
    %2214 = vmatprep.subr.mxu0 0.0
    %2215 = vmatpush1.msra.mxu0 %v1775
    %2216 = vmatprep.subr.mxu0 0.0
    %2217 = vmatpush1.msra.mxu0 %v1774
    %2218 = vmatprep.subr.mxu0 0.0
    %2219 = vmatpush1.msra.mxu0 %v1773
    %2220 = vmatprep.subr.mxu0 0.0
    %2221 = vmatpush2.msra.mxu0 0.0
    %2222 = vmatprep.subr.mxu0 0.0
    %2223 = vmatpush2.msra.mxu0 0.0
    %2224 = vmatprep.subr.mxu0 0.0
    %2225 = vmatpush2.msra.mxu0 0.0
    %2226 = vmatprep.subr.mxu0 0.0
    %2227 = vmatpush2.msra.mxu0 0.0
    %2228 = vmatprep.subr.mxu0 0.0
    %2229 = vmatpush2.msra.mxu0 0.0
    %2230 = vmatprep.subr.mxu0 0.0
    %2231 = vmatpush2.msra.mxu0 0.0
    %2232 = vmatprep.subr.mxu0 0.0
    %2233 = vmatpush2.msra.mxu0 0.0
    %2234 = vmatprep.subr.mxu0 0.0
    %2235 = vmatpush2.msra.mxu0 0.0
    %2236 = vmatprep.subr.mxu0 0.0
    %2237 = vmatpush2.msra.mxu0 0.0
    %2238 = vmatprep.subr.mxu0 0.0
    %2239 = vmatpush2.msra.mxu0 0.0
    %2240 = vmatprep.subr.mxu0 0.0
    %2241 = vmatpush2.msra.mxu0 0.0
    %2242 = vmatprep.subr.mxu0 0.0
    %2243 = vmatpush2.msra.mxu0 0.0
    %2244 = vmatprep.subr.mxu0 0.0
    %2245 = vmatpush2.msra.mxu0 0.0
    %2246 = vmatprep.subr.mxu0 0.0
    %2247 = vmatpush2.msra.mxu0 0.0
    %2248 = vmatprep.subr.mxu0 0.0
    %2249 = vmatpush2.msra.mxu0 0.0
    %2250 = vmatprep.subr.mxu0 0.0
    %2251 = vmatpush2.msra.mxu0 0.0
    %2252 = vmatprep.mubr.f32.mxu0 0.0
    %2253 = vmatmul.mubr.f32.gmra.mxu0 %v2183
    %v2254 = vpop.f32.mrf.mxu0
    %v2255 = vadd.f32 %v1855, %v2254
    %v2256 = vpop.f32.mrf.mxu0
    %2257 = vdwg.mxu0
    %v2258 = vrot.slane %v1598, 6
    %v2259 = vsel %vm37, %v2258, 0
    %v2262 = vsel %vm42, %v1862, 0
    %2264 = vmatprep.subr.mxu0 0.0
    %2265 = vmatpush1.msra.mxu0 0.0
    %2266 = vmatprep.subr.mxu0 0.0
    %2267 = vmatpush1.msra.mxu0 0.0
    %2268 = vmatprep.subr.mxu0 0.0
    %2269 = vmatpush1.msra.mxu0 0.0
    %2270 = vmatprep.subr.mxu0 0.0
    %2271 = vmatpush1.msra.mxu0 0.0
    %2272 = vmatprep.subr.mxu0 0.0
    %2273 = vmatpush1.msra.mxu0 0.0
    %2274 = vmatprep.subr.mxu0 0.0
    %2275 = vmatpush1.msra.mxu0 0.0
    %2276 = vmatprep.subr.mxu0 0.0
    %2277 = vmatpush1.msra.mxu0 0.0
    %2278 = vmatprep.subr.mxu0 0.0
    %2279 = vmatpush1.msra.mxu0 0.0
    %2280 = vmatprep.subr.mxu0 0.0
    %2281 = vmatpush1.msra.mxu0 0.0
    %2282 = vmatprep.subr.mxu0 0.0
    %2283 = vmatpush1.msra.mxu0 0.0
    %2284 = vmatprep.subr.mxu0 0.0
    %2285 = vmatpush1.msra.mxu0 0.0
    %2286 = vmatprep.subr.mxu0 0.0
    %2287 = vmatpush1.msra.mxu0 0.0
    %2288 = vmatprep.subr.mxu0 0.0
    %2289 = vmatpush1.msra.mxu0 %v2262
    %2290 = vmatprep.subr.mxu0 0.0
    %2291 = vmatpush1.msra.mxu0 %v1861
    %2292 = vmatprep.subr.mxu0 0.0
    %2293 = vmatpush1.msra.mxu0 %v1860
    %2294 = vmatprep.subr.mxu0 0.0
    %2295 = vmatpush1.msra.mxu0 %v1859
    %2296 = vmatprep.subr.mxu0 0.0
    %2297 = vmatpush2.msra.mxu0 0.0
    %2298 = vmatprep.subr.mxu0 0.0
    %2299 = vmatpush2.msra.mxu0 0.0
    %2300 = vmatprep.subr.mxu0 0.0
    %2301 = vmatpush2.msra.mxu0 0.0
    %2302 = vmatprep.subr.mxu0 0.0
    %2303 = vmatpush2.msra.mxu0 0.0
    %2304 = vmatprep.subr.mxu0 0.0
    %2305 = vmatpush2.msra.mxu0 0.0
    %2306 = vmatprep.subr.mxu0 0.0
    %2307 = vmatpush2.msra.mxu0 0.0
    %2308 = vmatprep.subr.mxu0 0.0
    %2309 = vmatpush2.msra.mxu0 0.0
    %2310 = vmatprep.subr.mxu0 0.0
    %2311 = vmatpush2.msra.mxu0 0.0
    %2312 = vmatprep.subr.mxu0 0.0
    %2313 = vmatpush2.msra.mxu0 0.0
    %2314 = vmatprep.subr.mxu0 0.0
    %2315 = vmatpush2.msra.mxu0 0.0
    %2316 = vmatprep.subr.mxu0 0.0
    %2317 = vmatpush2.msra.mxu0 0.0
    %2318 = vmatprep.subr.mxu0 0.0
    %2319 = vmatpush2.msra.mxu0 0.0
    %2320 = vmatprep.subr.mxu0 0.0
    %2321 = vmatpush2.msra.mxu0 0.0
    %2322 = vmatprep.subr.mxu0 0.0
    %2323 = vmatpush2.msra.mxu0 0.0
    %2324 = vmatprep.subr.mxu0 0.0
    %2325 = vmatpush2.msra.mxu0 0.0
    %2326 = vmatprep.subr.mxu0 0.0
    %2327 = vmatpush2.msra.mxu0 0.0
    %2328 = vmatprep.mubr.f32.mxu0 0.0
    %2329 = vmatmul.mubr.f32.gmra.mxu0 %v2259
    %v2330 = vpop.f32.mrf.mxu0
    %v2331 = vadd.f32 %v1941, %v2330
    %v2332 = vpop.f32.mrf.mxu0
    %2333 = vdwg.mxu0
    %v2334 = vsel %vm37, %v1599, 0
    %v2337 = vsel %vm42, %v1948, 0
    %2339 = vmatprep.subr.mxu0 0.0
    %2340 = vmatpush1.msra.mxu0 0.0
    %2341 = vmatprep.subr.mxu0 0.0
    %2342 = vmatpush1.msra.mxu0 0.0
    %2343 = vmatprep.subr.mxu0 0.0
    %2344 = vmatpush1.msra.mxu0 0.0
    %2345 = vmatprep.subr.mxu0 0.0
    %2346 = vmatpush1.msra.mxu0 0.0
    %2347 = vmatprep.subr.mxu0 0.0
    %2348 = vmatpush1.msra.mxu0 0.0
    %2349 = vmatprep.subr.mxu0 0.0
    %2350 = vmatpush1.msra.mxu0 0.0
    %2351 = vmatprep.subr.mxu0 0.0
    %2352 = vmatpush1.msra.mxu0 0.0
    %2353 = vmatprep.subr.mxu0 0.0
    %2354 = vmatpush1.msra.mxu0 0.0
    %2355 = vmatprep.subr.mxu0 0.0
    %2356 = vmatpush1.msra.mxu0 0.0
    %2357 = vmatprep.subr.mxu0 0.0
    %2358 = vmatpush1.msra.mxu0 0.0
    %2359 = vmatprep.subr.mxu0 0.0
    %2360 = vmatpush1.msra.mxu0 0.0
    %2361 = vmatprep.subr.mxu0 0.0
    %2362 = vmatpush1.msra.mxu0 0.0
    %2363 = vmatprep.subr.mxu0 0.0
    %2364 = vmatpush1.msra.mxu0 %v2337
    %2365 = vmatprep.subr.mxu0 0.0
    %2366 = vmatpush1.msra.mxu0 %v1947
    %2367 = vmatprep.subr.mxu0 0.0
    %2368 = vmatpush1.msra.mxu0 %v1946
    %2369 = vmatprep.subr.mxu0 0.0
    %2370 = vmatpush1.msra.mxu0 %v1945
    %2371 = vmatprep.subr.mxu0 0.0
    %2372 = vmatpush2.msra.mxu0 0.0
    %2373 = vmatprep.subr.mxu0 0.0
    %2374 = vmatpush2.msra.mxu0 0.0
    %2375 = vmatprep.subr.mxu0 0.0
    %2376 = vmatpush2.msra.mxu0 0.0
    %2377 = vmatprep.subr.mxu0 0.0
    %2378 = vmatpush2.msra.mxu0 0.0
    %2379 = vmatprep.subr.mxu0 0.0
    %2380 = vmatpush2.msra.mxu0 0.0
    %2381 = vmatprep.subr.mxu0 0.0
    %2382 = vmatpush2.msra.mxu0 0.0
    %2383 = vmatprep.subr.mxu0 0.0
    %2384 = vmatpush2.msra.mxu0 0.0
    %2385 = vmatprep.subr.mxu0 0.0
    %2386 = vmatpush2.msra.mxu0 0.0
    %2387 = vmatprep.subr.mxu0 0.0
    %2388 = vmatpush2.msra.mxu0 0.0
    %2389 = vmatprep.subr.mxu0 0.0
    %2390 = vmatpush2.msra.mxu0 0.0
    %2391 = vmatprep.subr.mxu0 0.0
    %2392 = vmatpush2.msra.mxu0 0.0
    %2393 = vmatprep.subr.mxu0 0.0
    %2394 = vmatpush2.msra.mxu0 0.0
    %2395 = vmatprep.subr.mxu0 0.0
    %2396 = vmatpush2.msra.mxu0 0.0
    %2397 = vmatprep.subr.mxu0 0.0
    %2398 = vmatpush2.msra.mxu0 0.0
    %2399 = vmatprep.subr.mxu0 0.0
    %2400 = vmatpush2.msra.mxu0 0.0
    %2401 = vmatprep.subr.mxu0 0.0
    %2402 = vmatpush2.msra.mxu0 0.0
    %2403 = vmatprep.mubr.f32.mxu0 0.0
    %2404 = vmatmul.mubr.f32.gmra.mxu0 %v2334
    %v2405 = vpop.f32.mrf.mxu0
    %v2406 = vadd.f32 %v2028, %v2405
    %v2407 = vpop.f32.mrf.mxu0
    %2408 = vdwg.mxu0
    %v2409 = vadd.f32 %v2103, %v2179
    %v2410 = vadd.f32 %v2255, %v2331
    %v2411 = vadd.f32 %v2409, %v2410
    %v2412 = vadd.f32 %v2411, %v2406
    %v2413 = vrot.slane %v16, 2
    %v2415 = vadd.f32 %v2412, %v2413
    %v2416 = vand.u32 2147483647, %v2415
    %v2417 = vsub.f32 0.0, %v2416
    %v2418 = vmul.f32 %v2417, 1.442695
    %v2419 = vpow.pop %v2418
    %v2420 = vadd.f32 %v2419, 1.0
    %v2421 = vrcp.pop %v2420
    %vm2422 = vcmp.ge.f32.partialorder %v2415, 0.0
    %v2423 = vmul.f32 %v2419, %v2421
    %v2424 = vsel %vm2422, %v2421, %v2423
    %vm2425 = vcmask 73728
    %2426 = vst.msk [vmem:[#allocation2] sm:$0x1] %vm2425, %v2424
    // Predicated region
    $region14: #{classifier_forward.1} parent=1 // pred_check
      _
    $region15: #{classifier_forward.1} parent=1 // pred_check_branch
      %2428 = sbr.rel (0) target = $region17
    $region16: #{classifier_forward.1} parent=1 // pred_region
      %s2430 = ssub.s32 16, 16
      %2431 = vsyncadd [#allocation3], %s2430
      %s2433 = sshll.u32 [#allocation2], 4
      %s2434 = int_to_ptr.vmem [resolvable:$true] %s2433
      %2436 = dma.vmem_to_hbm [thread:$0]  %s2434, 16, %s3, [#allocation3]
    $region17: #{classifier_forward.1} parent=1 // pred_fallthru
      _
    // Predicated region
    $region18: #{classifier_forward.1} parent=1 // pred_check
      _
    $region19: #{classifier_forward.1} parent=1 // pred_check_branch
      %2438 = sbr.rel (0) target = $region21
    $region20: #{classifier_forward.1} parent=1 // pred_region
      %2439 = dma.done [#allocation3], 16
    $region21: #{classifier_forward.1} parent=1 // pred_fallthru
      _
    %2440 = vsyncpa [#allocation3], 1

</llo_original>
